<compile_context>
chip_gen: v6e
topology: v6e:2x2x1
jax: 0.10.0
libtpu: 0.0.40
codegen_flags: <defaults>
</compile_context>

<pallas_src>
import functools

import jax
import jax.numpy as jnp
import numpy as np
from jax.experimental import pallas as pl
from jax.experimental.pallas import tpu as pltpu

KH = KW = 3          # kernel_size = 3 -> padding = 1
PAD = 1
STRIDE = 1
EPS = 1e-5           # nn.BatchNorm2d default
NEG_SLOPE = 0.01     # nn.LeakyReLU default


def _bilinear_matrix(n_in, n_out):
    """(n_out, n_in) interpolation matrix, bilinear, align_corners=True."""
    A = np.zeros((n_out, n_in), dtype=np.float32)
    if n_in == 1 or n_out == 1:
        A[:, 0] = 1.0
        return A
    for i in range(n_out):
        src = i * (n_in - 1) / (n_out - 1)
        i0 = min(int(np.floor(src)), n_in - 2)
        f = src - i0
        A[i, i0] += 1.0 - f
        A[i, i0 + 1] += f
    return A


# ---------------------------------------------------------------------------
# Kernel 1: fused bilinear-upsample + 3x3 conv (+bias) + one-pass BN partials.
# ---------------------------------------------------------------------------
def up_conv_stats_kernel(x_ref, p_ref, wf_ref, b_ref, conv_ref, sum_ref, sq_ref):
    # x_ref:    (1, H, W*Cin)        one ORIGINAL image, rows = image rows
    # p_ref:    (KH, Ho, H)          fused H-upsample + conv row-tap matrices
    # wf_ref:   (KH, W*Cin, Wo*Co)   fused W-upsample + pad + conv col-tap mats
    # b_ref:    (1, Wo*Co)           conv bias tiled over Wo (lane = wo*Co+co)
    # conv_ref: (Ho, Wo*Co)          lane-dense conv output slab for this image
    # sum_ref:  (1, 1, Wo*Co)        per-tile sum over rows (BN partial stats)
    # sq_ref:   (1, 1, Wo*Co)        per-tile sum of squares
    x = x_ref[0]                                     # (H, W*Cin)
    acc = jnp.zeros(conv_ref.shape, dtype=jnp.float32)   # (Ho, Wo*Co), ~8 vregs
    for kh in range(KH):                             # unrolled: 2 MXU matmuls/tap
        t = jnp.dot(p_ref[kh], x, preferred_element_type=jnp.float32)
        acc = acc + jnp.dot(t, wf_ref[kh], preferred_element_type=jnp.float32)
    acc = acc + b_ref[...]
    conv_ref[...] = acc
    sum_ref[...] = jnp.sum(acc, axis=0, keepdims=True).reshape(1, 1, -1)
    sq_ref[...] = jnp.sum(acc * acc, axis=0, keepdims=True).reshape(1, 1, -1)


# ---------------------------------------------------------------------------
# Kernel 2: BN normalise (folded per-lane scale/shift) + LeakyReLU, in place.
# ---------------------------------------------------------------------------
def bn_lrelu_kernel(conv_ref, scale_ref, shift_ref, o_ref):
    y = conv_ref[...] * scale_ref[...] + shift_ref[...]
    o_ref[...] = jnp.where(y >= 0.0, y, NEG_SLOPE * y)


@functools.partial(jax.jit, static_argnames=("scale_factor",))
def up_forward(x_nchw, w_oihw, bias, gamma, beta, scale_factor=2):
    """Up.forward: x (N, Cin, H, W) -> (N, Cout, scale*H, scale*W), float32."""
    N, Cin, H, W = x_nchw.shape
    Cout = w_oihw.shape[0]
    Ho, Wo = scale_factor * H, scale_factor * W
    L = Wo * Cout                        # slab lane width (multiple of 128 here)
    assert Ho % 8 == 0 and L % 128 == 0, (
        "demo kernel assumes 8-aligned Ho and 128-aligned Wo*Cout")

    f32 = jnp.float32

    # ---- trace-time constants (depend only on shapes + parameters) ----------
    A_h = _bilinear_matrix(H, Ho)                        # (Ho, H)
    A_w = _bilinear_matrix(W, Wo)                        # (Wo, W)

    # P_kh[ho, h] = A_h[ho+kh-1, h] for interior conv rows, else 0 (zero pad row)
    P = np.zeros((KH, Ho, H), dtype=np.float32)
    for kh in range(KH):
        for ho in range(Ho):
            p = ho + kh - PAD
            if 0 <= p < Ho:
                P[kh, ho, :] = A_h[p, :]
    P = jnp.asarray(P)

    # W-direction upsample + zero padding operator: (W*Cin, (Wo+2)*Cin)
    Bcore = np.kron(A_w.T, np.eye(Cin, dtype=np.float32))       # (W*Cin, Wo*Cin)
    Bpad = np.concatenate(
        [np.zeros((W * Cin, PAD * Cin), np.float32), Bcore,
         np.zeros((W * Cin, PAD * Cin), np.float32)], axis=1)
    Bpad = jnp.asarray(Bpad)

    # Block-banded conv column taps: Wband[kh][(wo+kw)*Cin+ci, wo*Cout+co] = w
    w_hwio = jnp.transpose(w_oihw, (2, 3, 1, 0)).astype(f32)     # (KH,KW,Cin,Cout)
    eyeW = jnp.eye(Wo, dtype=f32)
    Wband = jnp.zeros((KH, (Wo + 2 * PAD) * Cin, L), dtype=f32)
    for kh in range(KH):
        for kw in range(KW):
            band = jnp.einsum("ab,ij->aibj", eyeW, w_hwio[kh, kw])
            band = band.reshape(Wo * Cin, L)
            Wband = Wband.at[kh, kw * Cin:kw * Cin + Wo * Cin, :].add(band)
    # Fused W-side operator: upsample + pad + conv column taps in one matrix.
    Wf = jnp.einsum("ij,kjl->kil", Bpad, Wband)                  # (KH, W*Cin, L)

    bias_t = jnp.tile(bias.astype(f32), (Wo,)).reshape(1, L)

    # ---- input in image-row layout: one matrix row per ORIGINAL image row ----
    x_rows = jnp.transpose(x_nchw, (0, 2, 3, 1)).astype(f32).reshape(N, H, W * Cin)

    # ---- kernel 1: fused upsample+conv -> lane-dense slab + BN partials ------
    conv_slab, sums, sqs = pl.pallas_call(
        up_conv_stats_kernel,
        grid=(N,),
        in_specs=[
            pl.BlockSpec((1, H, W * Cin), lambda n: (n, 0, 0)),
            pl.BlockSpec((KH, Ho, H), lambda n: (0, 0, 0)),
            pl.BlockSpec((KH, W * Cin, L), lambda n: (0, 0, 0)),
            pl.BlockSpec((1, L), lambda n: (0, 0)),
        ],
        out_specs=(
            pl.BlockSpec((Ho, L), lambda n: (n, 0)),
            pl.BlockSpec((1, 1, L), lambda n: (n, 0, 0)),
            pl.BlockSpec((1, 1, L), lambda n: (n, 0, 0)),
        ),
        out_shape=(
            jax.ShapeDtypeStruct((N * Ho, L), f32),
            jax.ShapeDtypeStruct((N, 1, L), f32),
            jax.ShapeDtypeStruct((N, 1, L), f32),
        ),
        compiler_params=pltpu.CompilerParams(
            dimension_semantics=("parallel",)),   # independent tiles -> 2 TCs on v7x
    )(x_rows, P, Wf, bias_t)

    # ---- tiny per-channel reduction; fold BN into one per-lane scale/shift ---
    count = N * Ho * Wo
    tot = jnp.sum(sums, axis=(0, 1)).reshape(Wo, Cout).sum(axis=0)   # (Cout,)
    tot2 = jnp.sum(sqs, axis=(0, 1)).reshape(Wo, Cout).sum(axis=0)
    mean = tot / count
    var = jnp.maximum(tot2 / count - mean * mean, 0.0)   # biased batch variance
    scale_c = gamma.astype(f32) * jax.lax.rsqrt(var + EPS)
    shift_c = beta.astype(f32) - mean * scale_c
    scale_t = jnp.tile(scale_c, (Wo,)).reshape(1, L)
    shift_t = jnp.tile(shift_c, (Wo,)).reshape(1, L)

    # ---- kernel 2: normalise + LeakyReLU, in place on the slab ---------------
    y_slab = pl.pallas_call(
        bn_lrelu_kernel,
        grid=(N,),
        in_specs=[
            pl.BlockSpec((Ho, L), lambda n: (n, 0)),
            pl.BlockSpec((1, L), lambda n: (0, 0)),
            pl.BlockSpec((1, L), lambda n: (0, 0)),
        ],
        out_specs=pl.BlockSpec((Ho, L), lambda n: (n, 0)),
        out_shape=jax.ShapeDtypeStruct((N * Ho, L), f32),
        input_output_aliases={0: 0},              # reuse the conv slab buffer
        compiler_params=pltpu.CompilerParams(
            dimension_semantics=("parallel",)),
    )(conv_slab, scale_t, shift_t)

    # slab rows are (n, ho), lanes are (wo, co) -> NHWC -> NCHW
    y = y_slab.reshape(N, Ho, Wo, Cout)
    return jnp.transpose(y, (0, 3, 1, 2))


# ---------------------------------------------------------------------------
# Pure-JAX reference (independent formulation) for correctness checking.
# ---------------------------------------------------------------------------
def _upsample_bilinear_ref(x_nhwc, scale):
    """align_corners=True bilinear upsample via explicit gather."""
    N, H, W, C = x_nhwc.shape
    Ho, Wo = scale * H, scale * W
    hi = jnp.arange(Ho, dtype=jnp.float32) * (H - 1) / (Ho - 1)
    wi = jnp.arange(Wo, dtype=jnp.float32) * (W - 1) / (Wo - 1)
    h0 = jnp.clip(jnp.floor(hi).astype(jnp.int32), 0, H - 2)
    w0 = jnp.clip(jnp.floor(wi).astype(jnp.int32), 0, W - 2)
    fh = (hi - h0.astype(jnp.float32))[None, :, None, None]
    fw = (wi - w0.astype(jnp.float32))[None, None, :, None]
    g0 = x_nhwc[:, h0]
    g1 = x_nhwc[:, h0 + 1]
    x00, x01 = g0[:, :, w0], g0[:, :, w0 + 1]
    x10, x11 = g1[:, :, w0], g1[:, :, w0 + 1]
    top = x00 * (1.0 - fw) + x01 * fw
    bot = x10 * (1.0 - fw) + x11 * fw
    return top * (1.0 - fh) + bot * fh


def reference_forward(x_nchw, w_oihw, bias, gamma, beta, scale_factor=2):
    x = jnp.transpose(x_nchw, (0, 2, 3, 1)).astype(jnp.float32)
    up = _upsample_bilinear_ref(x, scale_factor)
    w_hwio = jnp.transpose(w_oihw, (2, 3, 1, 0)).astype(jnp.float32)
    conv = jax.lax.conv_general_dilated(
        up, w_hwio, window_strides=(STRIDE, STRIDE),
        padding=((PAD, PAD), (PAD, PAD)),
        dimension_numbers=("NHWC", "HWIO", "NHWC"),
    ) + bias.reshape(1, 1, 1, -1)
    mean = jnp.mean(conv, axis=(0, 1, 2), keepdims=True)
    var = jnp.mean((conv - mean) ** 2, axis=(0, 1, 2), keepdims=True)
    y = (conv - mean) * jax.lax.rsqrt(var + EPS) * gamma.reshape(1, 1, 1, -1) \
        + beta.reshape(1, 1, 1, -1)
    y = jnp.where(y >= 0, y, NEG_SLOPE * y)
    return jnp.transpose(y, (0, 3, 1, 2))


if __name__ == "__main__":
    N, Cin, Cout, H, W = 2, 4, 8, 16, 16
    SCALE = 2

    key = jax.random.PRNGKey(0)
    kx, kw, kb, kg, kbe = jax.random.split(key, 5)

    x = jax.random.normal(kx, (N, Cin, H, W), dtype=jnp.float32)
    # Conv2d parameters (PyTorch shape conventions)
    w = jax.random.normal(kw, (Cout, Cin, KH, KW), dtype=jnp.float32) * 0.1
    b = jax.random.normal(kb, (Cout,), dtype=jnp.float32) * 0.1
    # BatchNorm2d affine parameters (perturbed to exercise the scale/shift path)
    gamma = 1.0 + 0.1 * jax.random.normal(kg, (Cout,), dtype=jnp.float32)
    beta = 0.1 * jax.random.normal(kbe, (Cout,), dtype=jnp.float32)

    out = up_forward(x, w, b, gamma, beta, scale_factor=SCALE)
    out = jax.block_until_ready(out)

    ref = reference_forward(x, w, b, gamma, beta, scale_factor=SCALE)
    assert out.shape == (N, Cout, SCALE * H, SCALE * W), out.shape
    max_err = float(jnp.max(jnp.abs(out - ref)))
    assert jnp.allclose(out, ref, atol=2e-4, rtol=2e-4), (
        f"mismatch vs reference, max|err|={max_err}")

    print("KERNEL_OK")
</pallas_src>

<mosaic_0001>
module attributes {stable_mosaic.version = 11 : i64} {
  func.func @up_conv_stats_kernel(%arg0: i32, %arg1: memref<1x16x64xf32, #tpu.memory_space<vmem>>, %arg2: memref<3x32x16xf32, #tpu.memory_space<vmem>>, %arg3: memref<3x64x256xf32, #tpu.memory_space<vmem>>, %arg4: memref<1x256xf32, #tpu.memory_space<vmem>>, %arg5: memref<32x256xf32, #tpu.memory_space<vmem>>, %arg6: memref<1x1x256xf32, #tpu.memory_space<vmem>>, %arg7: memref<1x1x256xf32, #tpu.memory_space<vmem>>) attributes {dimension_semantics = [#tpu.dimension_semantics<parallel>], iteration_bounds = array<i64: 2>, scalar_prefetch = 0 : i64, scratch_operands = 0 : i64, tpu.core_type = #tpu.core_type<tc>, window_params = [{transform_indices = @transform_0, window_bounds = array<i64: 1, 16, 64>}, {pipeline_mode = #tpu.pipeline_mode<synchronous>, transform_indices = @transform_1, window_bounds = array<i64: 3, 32, 16>}, {pipeline_mode = #tpu.pipeline_mode<synchronous>, transform_indices = @transform_2, window_bounds = array<i64: 3, 64, 256>}, {pipeline_mode = #tpu.pipeline_mode<synchronous>, transform_indices = @transform_3, window_bounds = array<i64: 1, 256>}, {transform_indices = @transform_4, window_bounds = array<i64: 32, 256>}, {transform_indices = @transform_5, window_bounds = array<i64: 1, 1, 256>}, {transform_indices = @transform_6, window_bounds = array<i64: 1, 1, 256>}]} {
    %c0 = arith.constant 0 : index
    %c0_0 = arith.constant 0 : index
    %c0_1 = arith.constant 0 : index
    %0 = vector.load %arg1[%c0, %c0_0, %c0_1] : memref<1x16x64xf32, #tpu.memory_space<vmem>>, vector<1x16x64xf32>
    %1 = vector.shape_cast %0 : vector<1x16x64xf32> to vector<16x64xf32>
    %cst = arith.constant 0.000000e+00 : f32
    %2 = vector.broadcast %cst : f32 to vector<32x256xf32>
    %c0_2 = arith.constant 0 : index
    %c0_3 = arith.constant 0 : index
    %c0_4 = arith.constant 0 : index
    %3 = vector.load %arg2[%c0_2, %c0_3, %c0_4] : memref<3x32x16xf32, #tpu.memory_space<vmem>>, vector<1x32x16xf32>
    %4 = vector.shape_cast %3 : vector<1x32x16xf32> to vector<32x16xf32>
    %cst_5 = arith.constant dense<0.000000e+00> : vector<32x64xf32>
    %5 = tpu.matmul %4, %1, %cst_5 {dimension_numbers = #tpu.dot_dimension_numbers<[1], [0], [0], [1], [0, 0, 1, 1], [], []>} : vector<32x16xf32>, vector<16x64xf32>, vector<32x64xf32> -> vector<32x64xf32>
    %c0_6 = arith.constant 0 : index
    %c0_7 = arith.constant 0 : index
    %c0_8 = arith.constant 0 : index
    %6 = vector.load %arg3[%c0_6, %c0_7, %c0_8] : memref<3x64x256xf32, #tpu.memory_space<vmem>>, vector<1x64x256xf32>
    %7 = vector.shape_cast %6 : vector<1x64x256xf32> to vector<64x256xf32>
    %cst_9 = arith.constant dense<0.000000e+00> : vector<32x256xf32>
    %8 = tpu.matmul %5, %7, %cst_9 {dimension_numbers = #tpu.dot_dimension_numbers<[1], [0], [0], [1], [0, 0, 1, 1], [], []>} : vector<32x64xf32>, vector<64x256xf32>, vector<32x256xf32> -> vector<32x256xf32>
    %9 = arith.addf %2, %8 : vector<32x256xf32>
    %c1 = arith.constant 1 : index
    %c0_10 = arith.constant 0 : index
    %c0_11 = arith.constant 0 : index
    %10 = vector.load %arg2[%c1, %c0_10, %c0_11] : memref<3x32x16xf32, #tpu.memory_space<vmem>>, vector<1x32x16xf32>
    %11 = vector.shape_cast %10 : vector<1x32x16xf32> to vector<32x16xf32>
    %cst_12 = arith.constant dense<0.000000e+00> : vector<32x64xf32>
    %12 = tpu.matmul %11, %1, %cst_12 {dimension_numbers = #tpu.dot_dimension_numbers<[1], [0], [0], [1], [0, 0, 1, 1], [], []>} : vector<32x16xf32>, vector<16x64xf32>, vector<32x64xf32> -> vector<32x64xf32>
    %c1_13 = arith.constant 1 : index
    %c0_14 = arith.constant 0 : index
    %c0_15 = arith.constant 0 : index
    %13 = vector.load %arg3[%c1_13, %c0_14, %c0_15] : memref<3x64x256xf32, #tpu.memory_space<vmem>>, vector<1x64x256xf32>
    %14 = vector.shape_cast %13 : vector<1x64x256xf32> to vector<64x256xf32>
    %cst_16 = arith.constant dense<0.000000e+00> : vector<32x256xf32>
    %15 = tpu.matmul %12, %14, %cst_16 {dimension_numbers = #tpu.dot_dimension_numbers<[1], [0], [0], [1], [0, 0, 1, 1], [], []>} : vector<32x64xf32>, vector<64x256xf32>, vector<32x256xf32> -> vector<32x256xf32>
    %16 = arith.addf %9, %15 : vector<32x256xf32>
    %c2 = arith.constant 2 : index
    %c0_17 = arith.constant 0 : index
    %c0_18 = arith.constant 0 : index
    %17 = vector.load %arg2[%c2, %c0_17, %c0_18] : memref<3x32x16xf32, #tpu.memory_space<vmem>>, vector<1x32x16xf32>
    %18 = vector.shape_cast %17 : vector<1x32x16xf32> to vector<32x16xf32>
    %cst_19 = arith.constant dense<0.000000e+00> : vector<32x64xf32>
    %19 = tpu.matmul %18, %1, %cst_19 {dimension_numbers = #tpu.dot_dimension_numbers<[1], [0], [0], [1], [0, 0, 1, 1], [], []>} : vector<32x16xf32>, vector<16x64xf32>, vector<32x64xf32> -> vector<32x64xf32>
    %c2_20 = arith.constant 2 : index
    %c0_21 = arith.constant 0 : index
    %c0_22 = arith.constant 0 : index
    %20 = vector.load %arg3[%c2_20, %c0_21, %c0_22] : memref<3x64x256xf32, #tpu.memory_space<vmem>>, vector<1x64x256xf32>
    %21 = vector.shape_cast %20 : vector<1x64x256xf32> to vector<64x256xf32>
    %cst_23 = arith.constant dense<0.000000e+00> : vector<32x256xf32>
    %22 = tpu.matmul %19, %21, %cst_23 {dimension_numbers = #tpu.dot_dimension_numbers<[1], [0], [0], [1], [0, 0, 1, 1], [], []>} : vector<32x64xf32>, vector<64x256xf32>, vector<32x256xf32> -> vector<32x256xf32>
    %23 = arith.addf %16, %22 : vector<32x256xf32>
    %c0_24 = arith.constant 0 : index
    %c0_25 = arith.constant 0 : index
    %24 = vector.load %arg4[%c0_24, %c0_25] : memref<1x256xf32, #tpu.memory_space<vmem>>, vector<1x256xf32>
    %25 = vector.broadcast %24 : vector<1x256xf32> to vector<32x256xf32>
    %26 = arith.addf %23, %25 : vector<32x256xf32>
    %c0_26 = arith.constant 0 : index
    %c0_27 = arith.constant 0 : index
    %27 = vector.load %arg5[%c0_26, %c0_27] : memref<32x256xf32, #tpu.memory_space<vmem>>, vector<32x256xf32>
    tpu.vector_store %arg5[%c0_26, %c0_27], %26 {strides = array<i32>} : memref<32x256xf32, #tpu.memory_space<vmem>>, vector<32x256xf32>,
    %cst_28 = arith.constant dense<0.000000e+00> : vector<256xf32>
    %28 = vector.multi_reduction <add>, %26, %cst_28 [0] : vector<32x256xf32> to vector<256xf32>
    %29 = vector.shape_cast %28 : vector<256xf32> to vector<1x256xf32>
    %30 = vector.shape_cast %29 : vector<1x256xf32> to vector<1x1x256xf32>
    %c0_29 = arith.constant 0 : index
    %c0_30 = arith.constant 0 : index
    %c0_31 = arith.constant 0 : index
    %31 = vector.load %arg6[%c0_29, %c0_30, %c0_31] : memref<1x1x256xf32, #tpu.memory_space<vmem>>, vector<1x1x256xf32>
    tpu.vector_store %arg6[%c0_29, %c0_30, %c0_31], %30 {strides = array<i32>} : memref<1x1x256xf32, #tpu.memory_space<vmem>>, vector<1x1x256xf32>,
    %32 = arith.mulf %26, %26 : vector<32x256xf32>
    %cst_32 = arith.constant dense<0.000000e+00> : vector<256xf32>
    %33 = vector.multi_reduction <add>, %32, %cst_32 [0] : vector<32x256xf32> to vector<256xf32>
    %34 = vector.shape_cast %33 : vector<256xf32> to vector<1x256xf32>
    %35 = vector.shape_cast %34 : vector<1x256xf32> to vector<1x1x256xf32>
    %c0_33 = arith.constant 0 : index
    %c0_34 = arith.constant 0 : index
    %c0_35 = arith.constant 0 : index
    %36 = vector.load %arg7[%c0_33, %c0_34, %c0_35] : memref<1x1x256xf32, #tpu.memory_space<vmem>>, vector<1x1x256xf32>
    tpu.vector_store %arg7[%c0_33, %c0_34, %c0_35], %35 {strides = array<i32>} : memref<1x1x256xf32, #tpu.memory_space<vmem>>, vector<1x1x256xf32>,
    return
  }
  func.func @transform_0(%arg0: i32) -> (i32, i32, i32) {
    %c0_i32 = arith.constant 0 : i32
    %c0_i32_0 = arith.constant 0 : i32
    %c0_i32_1 = arith.constant 0 : i32
    return %arg0, %c0_i32, %c0_i32_0 : i32, i32, i32
  }
  func.func @transform_1(%arg0: i32) -> (i32, i32, i32) {
    %c0_i32 = arith.constant 0 : i32
    %c0_i32_0 = arith.constant 0 : i32
    %c0_i32_1 = arith.constant 0 : i32
    %c0_i32_2 = arith.constant 0 : i32
    return %c0_i32, %c0_i32_0, %c0_i32_1 : i32, i32, i32
  }
  func.func @transform_2(%arg0: i32) -> (i32, i32, i32) {
    %c0_i32 = arith.constant 0 : i32
    %c0_i32_0 = arith.constant 0 : i32
    %c0_i32_1 = arith.constant 0 : i32
    %c0_i32_2 = arith.constant 0 : i32
    return %c0_i32, %c0_i32_0, %c0_i32_1 : i32, i32, i32
  }
  func.func @transform_3(%arg0: i32) -> (i32, i32) {
    %c0_i32 = arith.constant 0 : i32
    %c0_i32_0 = arith.constant 0 : i32
    %c0_i32_1 = arith.constant 0 : i32
    return %c0_i32, %c0_i32_0 : i32, i32
  }
  func.func @transform_4(%arg0: i32) -> (i32, i32) {
    %c0_i32 = arith.constant 0 : i32
    %c0_i32_0 = arith.constant 0 : i32
    return %arg0, %c0_i32 : i32, i32
  }
  func.func @transform_5(%arg0: i32) -> (i32, i32, i32) {
    %c0_i32 = arith.constant 0 : i32
    %c0_i32_0 = arith.constant 0 : i32
    %c0_i32_1 = arith.constant 0 : i32
    return %arg0, %c0_i32, %c0_i32_0 : i32, i32, i32
  }
  func.func @transform_6(%arg0: i32) -> (i32, i32, i32) {
    %c0_i32 = arith.constant 0 : i32
    %c0_i32_0 = arith.constant 0 : i32
    %c0_i32_1 = arith.constant 0 : i32
    return %arg0, %c0_i32, %c0_i32_0 : i32, i32, i32
  }
}

module attributes {stable_mosaic.version = 11 : i64} {
  func.func @bn_lrelu_kernel(%arg0: i32, %arg1: memref<32x256xf32, #tpu.memory_space<vmem>>, %arg2: memref<1x256xf32, #tpu.memory_space<vmem>>, %arg3: memref<1x256xf32, #tpu.memory_space<vmem>>, %arg4: memref<32x256xf32, #tpu.memory_space<vmem>>) attributes {dimension_semantics = [#tpu.dimension_semantics<parallel>], iteration_bounds = array<i64: 2>, scalar_prefetch = 0 : i64, scratch_operands = 0 : i64, tpu.core_type = #tpu.core_type<tc>, window_params = [{transform_indices = @transform_0, window_bounds = array<i64: 32, 256>}, {pipeline_mode = #tpu.pipeline_mode<synchronous>, transform_indices = @transform_1, window_bounds = array<i64: 1, 256>}, {pipeline_mode = #tpu.pipeline_mode<synchronous>, transform_indices = @transform_2, window_bounds = array<i64: 1, 256>}, {transform_indices = @transform_3, window_bounds = array<i64: 32, 256>}]} {
    %c0 = arith.constant 0 : index
    %c0_0 = arith.constant 0 : index
    %0 = vector.load %arg1[%c0, %c0_0] : memref<32x256xf32, #tpu.memory_space<vmem>>, vector<32x256xf32>
    %c0_1 = arith.constant 0 : index
    %c0_2 = arith.constant 0 : index
    %1 = vector.load %arg2[%c0_1, %c0_2] : memref<1x256xf32, #tpu.memory_space<vmem>>, vector<1x256xf32>
    %2 = vector.broadcast %1 : vector<1x256xf32> to vector<32x256xf32>
    %3 = arith.mulf %0, %2 : vector<32x256xf32>
    %c0_3 = arith.constant 0 : index
    %c0_4 = arith.constant 0 : index
    %4 = vector.load %arg3[%c0_3, %c0_4] : memref<1x256xf32, #tpu.memory_space<vmem>>, vector<1x256xf32>
    %5 = vector.broadcast %4 : vector<1x256xf32> to vector<32x256xf32>
    %6 = arith.addf %3, %5 : vector<32x256xf32>
    %cst = arith.constant 0.000000e+00 : f32
    %7 = vector.broadcast %cst : f32 to vector<32x256xf32>
    %8 = arith.cmpf oge, %6, %7 : vector<32x256xf32>
    %cst_5 = arith.constant 0.00999999977 : f32
    %9 = vector.broadcast %cst_5 : f32 to vector<32x256xf32>
    %10 = arith.mulf %9, %6 : vector<32x256xf32>
    %11 = arith.select %8, %6, %10 : vector<32x256xi1>, vector<32x256xf32>
    %c0_6 = arith.constant 0 : index
    %c0_7 = arith.constant 0 : index
    %12 = vector.load %arg4[%c0_6, %c0_7] : memref<32x256xf32, #tpu.memory_space<vmem>>, vector<32x256xf32>
    tpu.vector_store %arg4[%c0_6, %c0_7], %11 {strides = array<i32>} : memref<32x256xf32, #tpu.memory_space<vmem>>, vector<32x256xf32>,
    return
  }
  func.func @transform_0(%arg0: i32) -> (i32, i32) {
    %c0_i32 = arith.constant 0 : i32
    %c0_i32_0 = arith.constant 0 : i32
    return %arg0, %c0_i32 : i32, i32
  }
  func.func @transform_1(%arg0: i32) -> (i32, i32) {
    %c0_i32 = arith.constant 0 : i32
    %c0_i32_0 = arith.constant 0 : i32
    %c0_i32_1 = arith.constant 0 : i32
    return %c0_i32, %c0_i32_0 : i32, i32
  }
  func.func @transform_2(%arg0: i32) -> (i32, i32) {
    %c0_i32 = arith.constant 0 : i32
    %c0_i32_0 = arith.constant 0 : i32
    %c0_i32_1 = arith.constant 0 : i32
    return %c0_i32, %c0_i32_0 : i32, i32
  }
  func.func @transform_3(%arg0: i32) -> (i32, i32) {
    %c0_i32 = arith.constant 0 : i32
    %c0_i32_0 = arith.constant 0 : i32
    return %arg0, %c0_i32 : i32, i32
  }
}

</mosaic_0001>

<llo_original>
// kernel: tile.18
$region0: #{tile.18}
  #allocation0 [shape = 's32[1]{0}', space=sflag, size = 0x4, scoped, tag = 'scoped memory for tile.18']
  %s0 = inlined_call_operand.vmem [shape: f32[8], index: 0, kind: input, shape index: {}]
  %s1 = inlined_call_operand.vmem [shape: f32[32,8], index: 1, kind: output, shape index: {}]
  // Predicated region
  $region2: #{tile.18} parent=0 // pred_check
    _
  $region3: #{tile.18} parent=0 // pred_check_branch
    %3 = sbr.rel (0) target = $region5
  $region4: #{tile.18} parent=0 // pred_region
    _
  $region5: #{tile.18} parent=0 // pred_fallthru
    _
  %v4 = vld [vmem:[%s0] ss:$0 sm:$0xff]
  %5 = vst [vmem:[%s1] sm:$0xff] %v4
  %s6 = scalar_lea.vmem %s1, 8
  %7 = vst [vmem:[%s6] sm:$0xff] %v4
  %s8 = scalar_lea.vmem %s1, 16
  %9 = vst [vmem:[%s8] sm:$0xff] %v4
  %s10 = scalar_lea.vmem %s1, 24
  %11 = vst [vmem:[%s10] sm:$0xff] %v4

// kernel: tile.19
$region0: #{tile.19}
  %s0 = inlined_call_operand.vmem [shape: f32[32,8], index: 0, kind: input, shape index: {}]
  %s1 = inlined_call_operand.vmem [shape: f32[1,256], index: 1, kind: output, shape index: {}]
  $region1: #{tile.19} parent=0
    #allocation0 [shape = 'u8[8192]{0}', space=vmem, size = 0x2000, scoped, tag = 'scoped mem for output reshape']
    %s2 = smov 3
    %v3 = vld [vmem:[%s0] ss:$16 sm:%s2]
    %vm4 = vcmask 64512
    %5 = vst.msk [vmem:[#allocation0] ss:$8 sm:$0x3] %vm4, %v3
    %s6 = scalar_lea.vmem %s0, 15
    %s7 = smov 3
    %v8 = vld [vmem:[%s6] ss:$16 sm:%s7]
    %9 = vrot.lane.b32.xlu0 %v8, 120
    %v10 = vpop.permute.xlu0 %9
    %vm11 = vcmask 1048512
    %12 = vst.msk [vmem:[#allocation0] ss:$8 sm:$0x3] %vm11, %v10
    %s13 = scalar_lea.vmem %s0, 14
    %s14 = smov 3
    %v15 = vld [vmem:[%s13] ss:$16 sm:%s14]
    %16 = vrot.lane.b32.xlu0 %v15, 112
    %v17 = vpop.permute.xlu0 %16
    %vm18 = vcmask 982912
    %19 = vst.msk [vmem:[#allocation0] ss:$8 sm:$0x3] %vm18, %v17
    %s20 = scalar_lea.vmem %s0, 13
    %s21 = smov 3
    %v22 = vld [vmem:[%s20] ss:$16 sm:%s21]
    %23 = vrot.lane.b32.xlu0 %v22, 104
    %v24 = vpop.permute.xlu0 %23
    %vm25 = vcmask 917312
    %26 = vst.msk [vmem:[#allocation0] ss:$8 sm:$0x3] %vm25, %v24
    %s27 = scalar_lea.vmem %s0, 12
    %s28 = smov 3
    %v29 = vld [vmem:[%s27] ss:$16 sm:%s28]
    %30 = vrot.lane.b32.xlu0 %v29, 96
    %v31 = vpop.permute.xlu0 %30
    %vm32 = vcmask 851712
    %33 = vst.msk [vmem:[#allocation0] ss:$8 sm:$0x3] %vm32, %v31
    %s34 = scalar_lea.vmem %s0, 11
    %s35 = smov 3
    %v36 = vld [vmem:[%s34] ss:$16 sm:%s35]
    %37 = vrot.lane.b32.xlu0 %v36, 88
    %v38 = vpop.permute.xlu0 %37
    %vm39 = vcmask 786112
    %40 = vst.msk [vmem:[#allocation0] ss:$8 sm:$0x3] %vm39, %v38
    %s41 = scalar_lea.vmem %s0, 10
    %s42 = smov 3
    %v43 = vld [vmem:[%s41] ss:$16 sm:%s42]
    %44 = vrot.lane.b32.xlu0 %v43, 80
    %v45 = vpop.permute.xlu0 %44
    %vm46 = vcmask 720512
    %47 = vst.msk [vmem:[#allocation0] ss:$8 sm:$0x3] %vm46, %v45
    %s48 = scalar_lea.vmem %s0, 9
    %s49 = smov 3
    %v50 = vld [vmem:[%s48] ss:$16 sm:%s49]
    %51 = vrot.lane.b32.xlu0 %v50, 72
    %v52 = vpop.permute.xlu0 %51
    %vm53 = vcmask 654912
    %54 = vst.msk [vmem:[#allocation0] ss:$8 sm:$0x3] %vm53, %v52
    %s55 = scalar_lea.vmem %s0, 8
    %s56 = smov 3
    %v57 = vld [vmem:[%s55] ss:$16 sm:%s56]
    %58 = vrot.lane.b32.xlu0 %v57, 64
    %v59 = vpop.permute.xlu0 %58
    %vm60 = vcmask 589312
    %61 = vst.msk [vmem:[#allocation0] ss:$8 sm:$0x3] %vm60, %v59
    %s62 = scalar_lea.vmem %s0, 7
    %s63 = smov 3
    %v64 = vld [vmem:[%s62] ss:$16 sm:%s63]
    %65 = vrot.lane.b32.xlu0 %v64, 56
    %v66 = vpop.permute.xlu0 %65
    %vm67 = vcmask 523712
    %68 = vst.msk [vmem:[#allocation0] ss:$8 sm:$0x3] %vm67, %v66
    %s69 = scalar_lea.vmem %s0, 6
    %s70 = smov 3
    %v71 = vld [vmem:[%s69] ss:$16 sm:%s70]
    %72 = vrot.lane.b32.xlu0 %v71, 48
    %v73 = vpop.permute.xlu0 %72
    %vm74 = vcmask 458112
    %75 = vst.msk [vmem:[#allocation0] ss:$8 sm:$0x3] %vm74, %v73
    %s76 = scalar_lea.vmem %s0, 5
    %s77 = smov 3
    %v78 = vld [vmem:[%s76] ss:$16 sm:%s77]
    %79 = vrot.lane.b32.xlu0 %v78, 40
    %v80 = vpop.permute.xlu0 %79
    %vm81 = vcmask 392512
    %82 = vst.msk [vmem:[#allocation0] ss:$8 sm:$0x3] %vm81, %v80
    %s83 = scalar_lea.vmem %s0, 4
    %s84 = smov 3
    %v85 = vld [vmem:[%s83] ss:$16 sm:%s84]
    %86 = vrot.lane.b32.xlu0 %v85, 32
    %v87 = vpop.permute.xlu0 %86
    %vm88 = vcmask 326912
    %89 = vst.msk [vmem:[#allocation0] ss:$8 sm:$0x3] %vm88, %v87
    %s90 = scalar_lea.vmem %s0, 3
    %s91 = smov 3
    %v92 = vld [vmem:[%s90] ss:$16 sm:%s91]
    %93 = vrot.lane.b32.xlu0 %v92, 24
    %v94 = vpop.permute.xlu0 %93
    %vm95 = vcmask 261312
    %96 = vst.msk [vmem:[#allocation0] ss:$8 sm:$0x3] %vm95, %v94
    %s97 = scalar_lea.vmem %s0, 2
    %s98 = smov 3
    %v99 = vld [vmem:[%s97] ss:$16 sm:%s98]
    %100 = vrot.lane.b32.xlu0 %v99, 16
    %v101 = vpop.permute.xlu0 %100
    %vm102 = vcmask 195712
    %103 = vst.msk [vmem:[#allocation0] ss:$8 sm:$0x3] %vm102, %v101
    %s104 = scalar_lea.vmem %s0, 1
    %s105 = smov 3
    %v106 = vld [vmem:[%s104] ss:$16 sm:%s105]
    %107 = vrot.lane.b32.xlu0 %v106, 8
    %v108 = vpop.permute.xlu0 %107
    %vm109 = vcmask 130112
    %110 = vst.msk [vmem:[#allocation0] ss:$8 sm:$0x3] %vm109, %v108
    %s112 = sshll.u32 1, 1
    %s113 = ssub.s32 %s112, 1
    %v115 = vld [vmem:[#allocation0] sm:%s113]
    %s116 = sshll.u32 1, 1
    %s117 = ssub.s32 %s116, 1
    %118 = vst [vmem:[%s1] sm:%s117] %v115
    %s119 = scalar_lea.vmem [#allocation0], 8
    %v120 = vld [vmem:[%s119] sm:%s113]
    %s121 = sshll.u32 1, 1
    %s122 = ssub.s32 %s121, 1
    %s123 = scalar_lea.vmem %s1, 1
    %124 = vst [vmem:[%s123] sm:%s122] %v120

// kernel: up_forward.3
$region0: #{up_forward.3}
  #allocation0 [shape = 'u32[]', space=smem, size = 0x4, offset = 0x4, fixed_abs, tag = 'smem constant byte address 0x4 - core index']
  #allocation1 [shape = 'u32[144,128]{1,0:T(1,128)}', space=vmem, size = 0x12000, scoped, tag = 'internal scratch']
  %s0 = inlined_call_operand.vmem [shape: f32[64,256], index: 0, kind: input, shape index: {}, may-alias: {0,3}]
  %s1 = inlined_call_operand.vmem [shape: f32[1,256], index: 1, kind: input, shape index: {}]
  %s2 = inlined_call_operand.vmem [shape: f32[1,256], index: 2, kind: input, shape index: {}]
  %s3 = inlined_call_operand.vmem [shape: f32[64,256], index: 3, kind: output, shape index: {}, may-alias: {0,3}]
  %s4 = sld [smem:[#allocation0]]
  $region45: #{up_forward.3} parent=0
    _
  %s6 = ssub.s32 1, %s4
  %s7 = scalar_select 0, %s6, %s4
  loop: start=0, step=1, limit=4
  $region2: #{up_forward.3} parent=0 // loop_pre_header
    _
  $region3: #{up_forward.3} parent=0 // loop_header
    %s9 = sphi 0, %s13
    %p10 = scmp.ge.s32.totalorder %s9, 4
    %s19 = sphi 0, %s21
    %s22 = sphi 0, %s19
    %s23 = sphi 0, %s22
    %s39 = sphi 0, %s23
    %s43 = sphi 0, %s43
    %s45 = sphi 0, %s43
    %s46 = sphi 0, %s45
    %s60 = sphi 0, %s46
    %s64 = sphi 0, %s64
    %s66 = sphi 0, %s64
    %s67 = sphi 0, %s66
    %s81 = sphi 0, %s67
    %s87 = sphi 0, %s89
    %s90 = sphi 0, %s87
    %s91 = sphi 0, %s90
    %s107 = sphi 0, %s91
  $region4: #{up_forward.3} parent=0 // loop_header_branch
    %12 = sbr.rel (%p10) target = $region8
  $region5: #{up_forward.3} parent=0 // loop_body
    %s14 = ssub.s32 %s9, 1
    %s15 = ssub.s32 %s9, 2
    %s16 = sadd.s32 %s9, 1
    %s17 = ssub.s32 %s9, %s16
    %p18 = scmp.eq.s32.totalorder %s17, 0
    %s20 = sadd.s32 %s19, 1
    %s21 = scalar_select %p18, %s19, %s20
    %p24 = pneg %p18
    %p25 = scmp.eq.s32.totalorder %s9, 1
    %p26 = por %p24, %p25
    %p27 = scmp.ne.s32.totalorder %s19, %s22
    %p28 = scmp.eq.s32.totalorder %s9, 0
    %p29 = por %p27, %p28
    %p30 = scmp.ne.s32.totalorder %s19, %s22
    %p31 = scmp.eq.s32.totalorder %s14, 1
    %p32 = por %p30, %p31
    %p33 = scmp.ne.s32.totalorder %s22, %s23
    %p34 = scmp.eq.s32.totalorder %s14, 0
    %p35 = por %p33, %p34
    %p36 = scmp.ne.s32.totalorder %s22, %s23
    %p37 = scmp.eq.s32.totalorder %s15, 1
    %p38 = por %p36, %p37
    %p40 = scmp.ne.s32.totalorder %s23, %s39
    %p41 = scmp.eq.s32.totalorder %s15, 0
    %p42 = por %p40, %p41
    %s44 = sadd.s32 %s43, 1
    %p47 = scmp.eq.s32.totalorder %s9, 1
    %p48 = scmp.ne.s32.totalorder %s43, %s45
    %p49 = scmp.eq.s32.totalorder %s9, 0
    %p50 = por %p48, %p49
    %p51 = scmp.ne.s32.totalorder %s43, %s45
    %p52 = scmp.eq.s32.totalorder %s14, 1
    %p53 = por %p51, %p52
    %p54 = scmp.ne.s32.totalorder %s45, %s46
    %p55 = scmp.eq.s32.totalorder %s14, 0
    %p56 = por %p54, %p55
    %p57 = scmp.ne.s32.totalorder %s45, %s46
    %p58 = scmp.eq.s32.totalorder %s15, 1
    %p59 = por %p57, %p58
    %p61 = scmp.ne.s32.totalorder %s46, %s60
    %p62 = scmp.eq.s32.totalorder %s15, 0
    %p63 = por %p61, %p62
    %s65 = sadd.s32 %s64, 1
    %p68 = scmp.eq.s32.totalorder %s9, 1
    %p69 = scmp.ne.s32.totalorder %s64, %s66
    %p70 = scmp.eq.s32.totalorder %s9, 0
    %p71 = por %p69, %p70
    %p72 = scmp.ne.s32.totalorder %s64, %s66
    %p73 = scmp.eq.s32.totalorder %s14, 1
    %p74 = por %p72, %p73
    %p75 = scmp.ne.s32.totalorder %s66, %s67
    %p76 = scmp.eq.s32.totalorder %s14, 0
    %p77 = por %p75, %p76
    %p78 = scmp.ne.s32.totalorder %s66, %s67
    %p79 = scmp.eq.s32.totalorder %s15, 1
    %p80 = por %p78, %p79
    %p82 = scmp.ne.s32.totalorder %s67, %s81
    %p83 = scmp.eq.s32.totalorder %s15, 0
    %p84 = por %p82, %p83
    %s85 = ssub.s32 %s9, %s16
    %p86 = scmp.eq.s32.totalorder %s85, 0
    %s88 = sadd.s32 %s87, 1
    %s89 = scalar_select %p86, %s87, %s88
    %p92 = pneg %p86
    %p93 = scmp.eq.s32.totalorder %s9, 1
    %p94 = por %p92, %p93
    %p95 = scmp.ne.s32.totalorder %s87, %s90
    %p96 = scmp.eq.s32.totalorder %s9, 0
    %p97 = por %p95, %p96
    %p98 = scmp.ne.s32.totalorder %s87, %s90
    %p99 = scmp.eq.s32.totalorder %s14, 1
    %p100 = por %p98, %p99
    %p101 = scmp.ne.s32.totalorder %s90, %s91
    %p102 = scmp.eq.s32.totalorder %s14, 0
    %p103 = por %p101, %p102
    %p104 = scmp.ne.s32.totalorder %s90, %s91
    %p105 = scmp.eq.s32.totalorder %s15, 1
    %p106 = por %p104, %p105
    %p108 = scmp.ne.s32.totalorder %s91, %s107
    %p109 = scmp.eq.s32.totalorder %s15, 0
    %p110 = por %p108, %p109
    %p111 = scmp.le.s32.totalorder 1, %s9
    %p112 = scmp.lt.s32.totalorder %s9, 3
    %p113 = pnand %p111, %p112
    %p114 = pneg %p113
    // Predicated region
    $region9: #{up_forward.3} parent=5 // pred_check
      _
    $region10: #{up_forward.3} parent=5 // pred_check_branch
      %116 = sbr.rel (%p113) target = $region12
    $region11: #{up_forward.3} parent=5 // pred_region
      %s117 = ssub.s32 %s9, 1
      // Predicated region
      $region13: #{up_forward.3} parent=11 // pred_check
        %p118 = pneg %p56
      $region14: #{up_forward.3} parent=11 // pred_check_branch
        %120 = sbr.rel (%p118) target = $region16
      $region15: #{up_forward.3} parent=11 // pred_region
        _
      $region16: #{up_forward.3} parent=11 // pred_fallthru
        _
      // Predicated region
      $region17: #{up_forward.3} parent=11 // pred_check
        %p121 = pneg %p77
      $region18: #{up_forward.3} parent=11 // pred_check_branch
        %123 = sbr.rel (%p121) target = $region20
      $region19: #{up_forward.3} parent=11 // pred_region
        _
      $region20: #{up_forward.3} parent=11 // pred_fallthru
        _
    $region12: #{up_forward.3} parent=5 // pred_fallthru
      _
    %p124 = scmp.lt.s32.totalorder %s9, 2
    // Predicated region
    $region21: #{up_forward.3} parent=5 // pred_check
      %p125 = pneg %p124
    $region22: #{up_forward.3} parent=5 // pred_check_branch
      %127 = sbr.rel (%p125) target = $region24
    $region23: #{up_forward.3} parent=5 // pred_region
      // Predicated region
      $region25: #{up_forward.3} parent=23 // pred_check
        %p128 = pneg %p29
      $region26: #{up_forward.3} parent=23 // pred_check_branch
        %130 = sbr.rel (%p128) target = $region28
      $region27: #{up_forward.3} parent=23 // pred_region
        %s131 = smul.u32 4, %s9
        %p132 = scmp.lt.s32.totalorder %s131, 7
        %s133 = scalar_select %p132, %s131, 7
        %s134 = smul.addr %s133, 2
        %s135 = smul.addr %s134, 8
        %s136 = scalar_lea.vmem %s0, %s135
        %s137 = smul.u32 4, %s9
      $region28: #{up_forward.3} parent=23 // pred_fallthru
        _
    $region24: #{up_forward.3} parent=5 // pred_fallthru
      _
    %p138 = scmp.le.s32.totalorder 1, %s9
    %p139 = scmp.lt.s32.totalorder %s9, 3
    %p140 = pnand %p138, %p139
    %p141 = pneg %p140
    // Predicated region
    $region29: #{up_forward.3} parent=5 // pred_check
      _
    $region30: #{up_forward.3} parent=5 // pred_check_branch
      %143 = sbr.rel (%p140) target = $region32
    $region31: #{up_forward.3} parent=5 // pred_region
      %s144 = ssub.s32 %s9, 1
      %s145 = smul.u32 4, %s14
      %p146 = scmp.lt.s32.totalorder %s145, 7
      %s147 = scalar_select %p146, %s145, 7
      %s148 = smul.addr %s147, 2
      %s149 = smul.addr %s148, 8
      %s150 = scalar_lea.vmem %s0, %s149
      %p151 = pneg %p35
      %p152 = pneg %p32
      %p153 = pneg %p56
      %p154 = pneg %p53
      %p155 = pneg %p77
      %p156 = pneg %p74
      %p157 = pneg %p103
      %p158 = pneg %p100
      %s159 = smul.u32 4, %s14
      %p160 = scmp.lt.s32.totalorder %s159, 7
      %s161 = scalar_select %p160, %s159, 7
      %s162 = smul.addr %s161, 2
      %s163 = smul.addr %s162, 8
      %s164 = scalar_lea.vmem %s3, %s163
      %s165 = smul.u32 4, %s14
      %p166 = scmp.lt.s32.totalorder %s165, 7
      %s167 = scalar_select %p166, %s165, 7
      %s168 = smul.addr %s167, 2
      %s169 = smul.addr %s168, 8
      %s170 = scalar_lea.vmem %s0, %s169
      %s171 = smul.u32 4, %s14
      %s172 = smul.u32 4, %s14
      %p173 = scmp.lt.s32.totalorder %s172, 7
      %s174 = scalar_select %p173, %s172, 7
      %s175 = smul.addr %s174, 2
      %s176 = smul.addr %s175, 8
      %s177 = scalar_lea.vmem %s3, %s176
      %s178 = smul.u32 4, %s14
      %v179 = vld [vmem:[%s170] sm:$0xff]
      %v180 = vld [vmem:[%s170 + $0x8] sm:$0xff]
      %v181 = vld [vmem:[%s170 + $0x10] sm:$0xff]
      %v182 = vld [vmem:[%s170 + $0x18] sm:$0xff]
      %v183 = vld [vmem:[%s170 + $0x20] sm:$0xff]
      %v184 = vld [vmem:[%s170 + $0x28] sm:$0xff]
      %v185 = vld [vmem:[%s170 + $0x30] sm:$0xff]
      %v186 = vld [vmem:[%s170 + $0x38] sm:$0xff]
      %v187 = vld [vmem:[%s1] sm:$0x3]
      %v189 = vlaneseq
      %v190 = vshrl.u32 %v189, 7
      %v191 = vsub.s32 0, %v190
      %v192 = vrot.slane %v187, %v191
      %v193 = vlaneseq
      %v194 = vshrl.u32 %v193, 7
      %v195 = vsub.s32 1, %v194
      %v196 = vrot.slane %v187, %v195
      %v199 = vmul.f32 %v179, %v192
      %v200 = vmul.f32 %v180, %v196
      %v201 = vmul.f32 %v181, %v192
      %v202 = vmul.f32 %v182, %v196
      %v203 = vmul.f32 %v183, %v192
      %v204 = vmul.f32 %v184, %v196
      %v205 = vmul.f32 %v185, %v192
      %v206 = vmul.f32 %v186, %v196
      %v207 = vld [vmem:[%s2] sm:$0x3]
      %v209 = vlaneseq
      %v210 = vshrl.u32 %v209, 7
      %v211 = vsub.s32 0, %v210
      %v212 = vrot.slane %v207, %v211
      %v213 = vlaneseq
      %v214 = vshrl.u32 %v213, 7
      %v215 = vsub.s32 1, %v214
      %v216 = vrot.slane %v207, %v215
      %v219 = vadd.f32 %v199, %v212
      %v220 = vadd.f32 %v200, %v216
      %v221 = vadd.f32 %v201, %v212
      %v222 = vadd.f32 %v202, %v216
      %v223 = vadd.f32 %v203, %v212
      %v224 = vadd.f32 %v204, %v216
      %v225 = vadd.f32 %v205, %v212
      %v226 = vadd.f32 %v206, %v216
      %vm227 = vcmp.ge.f32.partialorder %v219, 0.0
      %vm228 = vcmp.ge.f32.partialorder %v220, 0.0
      %vm229 = vcmp.ge.f32.partialorder %v221, 0.0
      %vm230 = vcmp.ge.f32.partialorder %v222, 0.0
      %vm231 = vcmp.ge.f32.partialorder %v223, 0.0
      %vm232 = vcmp.ge.f32.partialorder %v224, 0.0
      %vm233 = vcmp.ge.f32.partialorder %v225, 0.0
      %vm234 = vcmp.ge.f32.partialorder %v226, 0.0
      %v235 = vmul.f32 %v219, 0.01
      %v236 = vmul.f32 %v220, 0.01
      %v237 = vmul.f32 %v221, 0.01
      %v238 = vmul.f32 %v222, 0.01
      %v239 = vmul.f32 %v223, 0.01
      %v240 = vmul.f32 %v224, 0.01
      %v241 = vmul.f32 %v225, 0.01
      %v242 = vmul.f32 %v226, 0.01
      %v243 = vsel %vm227, %v219, %v235
      %v244 = vsel %vm228, %v220, %v236
      %v245 = vsel %vm229, %v221, %v237
      %v246 = vsel %vm230, %v222, %v238
      %v247 = vsel %vm231, %v223, %v239
      %v248 = vsel %vm232, %v224, %v240
      %v249 = vsel %vm233, %v225, %v241
      %v250 = vsel %vm234, %v226, %v242
      %251 = vst [vmem:[%s177] sm:$0xff] %v243
      %252 = vst [vmem:[%s177 + $0x8] sm:$0xff] %v244
      %253 = vst [vmem:[%s177 + $0x10] sm:$0xff] %v245
      %254 = vst [vmem:[%s177 + $0x18] sm:$0xff] %v246
      %255 = vst [vmem:[%s177 + $0x20] sm:$0xff] %v247
      %256 = vst [vmem:[%s177 + $0x28] sm:$0xff] %v248
      %257 = vst [vmem:[%s177 + $0x30] sm:$0xff] %v249
      %258 = vst [vmem:[%s177 + $0x38] sm:$0xff] %v250
      %s259 = smul.u32 4, %s14
      %p260 = scmp.lt.s32.totalorder %s259, 7
      %s261 = scalar_select %p260, %s259, 7
      %s262 = smul.addr %s261, 2
      %s263 = smul.addr %s262, 8
      %s264 = scalar_lea.vmem %s3, %s263
      // Predicated region
      $region33: #{up_forward.3} parent=31 // pred_check
        %p265 = pneg %p100
      $region34: #{up_forward.3} parent=31 // pred_check_branch
        %267 = sbr.rel (%p265) target = $region36
      $region35: #{up_forward.3} parent=31 // pred_region
        %s268 = smul.u32 4, %s14
      $region36: #{up_forward.3} parent=31 // pred_fallthru
        _
    $region32: #{up_forward.3} parent=5 // pred_fallthru
      _
    %p269 = scmp.le.s32.totalorder 2, %s9
    // Predicated region
    $region37: #{up_forward.3} parent=5 // pred_check
      %p270 = pneg %p269
    $region38: #{up_forward.3} parent=5 // pred_check_branch
      %272 = sbr.rel (%p270) target = $region40
    $region39: #{up_forward.3} parent=5 // pred_region
      %s273 = ssub.s32 %s9, 2
      // Predicated region
      $region41: #{up_forward.3} parent=39 // pred_check
        %p274 = pneg %p106
      $region42: #{up_forward.3} parent=39 // pred_check_branch
        %276 = sbr.rel (%p274) target = $region44
      $region43: #{up_forward.3} parent=39 // pred_region
        %s277 = smul.u32 4, %s15
        %p278 = scmp.lt.s32.totalorder %s277, 7
        %s279 = scalar_select %p278, %s277, 7
        %s280 = smul.addr %s279, 2
        %s281 = smul.addr %s280, 8
        %s282 = scalar_lea.vmem %s3, %s281
      $region44: #{up_forward.3} parent=39 // pred_fallthru
        _
    $region40: #{up_forward.3} parent=5 // pred_fallthru
      _
  $region6: #{up_forward.3} parent=0 // loop_footer
    %s13 = sadd.s32 1, %s9
  $region7: #{up_forward.3} parent=0 // loop_footer_branch
    %8 = sbr.rel target = $region3
  $region8: #{up_forward.3} parent=0 // loop_exit
    _

// kernel: up_forward.2
$region0: #{up_forward.2}
  #allocation0 [shape = 'u32[]', space=smem, size = 0x4, offset = 0x4, fixed_abs, tag = 'smem constant byte address 0x4 - core index']
  #allocation1 [shape = 'u32[144,128]{1,0:T(1,128)}', space=vmem, size = 0x12000, scoped, tag = 'internal scratch']
  %s0 = inlined_call_operand.vmem [shape: f32[2,16,64], index: 0, kind: input, shape index: {}]
  %s1 = inlined_call_operand.vmem [shape: f32[3,32,16], index: 1, kind: input, shape index: {}]
  %s2 = inlined_call_operand.vmem [shape: f32[3,64,256], index: 2, kind: input, shape index: {}]
  %s3 = inlined_call_operand.vmem [shape: f32[1,256], index: 3, kind: input, shape index: {}]
  %s4 = inlined_call_operand.vmem [shape: f32[64,256], index: 4, kind: output, shape index: {0}]
  %s5 = inlined_call_operand.vmem [shape: f32[2,1,256], index: 5, kind: output, shape index: {1}]
  %s6 = inlined_call_operand.vmem [shape: f32[2,1,256], index: 6, kind: output, shape index: {2}]
  %7 = xla_tuple %s4, %s5, %s6
  %s8 = sld [smem:[#allocation0]]
  $region65: #{up_forward.2} parent=0
    _
  %s10 = ssub.s32 1, %s8
  %s11 = scalar_select 0, %s10, %s8
  loop: start=0, step=1, limit=4
  $region2: #{up_forward.2} parent=0 // loop_pre_header
    _
  $region3: #{up_forward.2} parent=0 // loop_header
    %s13 = sphi 0, %s17
    %p14 = scmp.ge.s32.totalorder %s13, 4
    %s23 = sphi 0, %s25
    %s26 = sphi 0, %s23
    %s27 = sphi 0, %s26
    %s43 = sphi 0, %s27
    %s47 = sphi 0, %s47
    %s49 = sphi 0, %s47
    %s50 = sphi 0, %s49
    %s64 = sphi 0, %s50
    %s68 = sphi 0, %s68
    %s70 = sphi 0, %s68
    %s71 = sphi 0, %s70
    %s85 = sphi 0, %s71
    %s89 = sphi 0, %s89
    %s91 = sphi 0, %s89
    %s92 = sphi 0, %s91
    %s106 = sphi 0, %s92
    %s112 = sphi 0, %s114
    %s115 = sphi 0, %s112
    %s116 = sphi 0, %s115
    %s132 = sphi 0, %s116
    %s138 = sphi 0, %s140
    %s141 = sphi 0, %s138
    %s142 = sphi 0, %s141
    %s158 = sphi 0, %s142
    %s164 = sphi 0, %s166
    %s167 = sphi 0, %s164
    %s168 = sphi 0, %s167
    %s184 = sphi 0, %s168
  $region4: #{up_forward.2} parent=0 // loop_header_branch
    %16 = sbr.rel (%p14) target = $region8
  $region5: #{up_forward.2} parent=0 // loop_body
    %s18 = ssub.s32 %s13, 1
    %s19 = ssub.s32 %s13, 2
    %s20 = sadd.s32 %s13, 1
    %s21 = ssub.s32 %s13, %s20
    %p22 = scmp.eq.s32.totalorder %s21, 0
    %s24 = sadd.s32 %s23, 1
    %s25 = scalar_select %p22, %s23, %s24
    %p28 = pneg %p22
    %p29 = scmp.eq.s32.totalorder %s13, 1
    %p30 = por %p28, %p29
    %p31 = scmp.ne.s32.totalorder %s23, %s26
    %p32 = scmp.eq.s32.totalorder %s13, 0
    %p33 = por %p31, %p32
    %p34 = scmp.ne.s32.totalorder %s23, %s26
    %p35 = scmp.eq.s32.totalorder %s18, 1
    %p36 = por %p34, %p35
    %p37 = scmp.ne.s32.totalorder %s26, %s27
    %p38 = scmp.eq.s32.totalorder %s18, 0
    %p39 = por %p37, %p38
    %p40 = scmp.ne.s32.totalorder %s26, %s27
    %p41 = scmp.eq.s32.totalorder %s19, 1
    %p42 = por %p40, %p41
    %p44 = scmp.ne.s32.totalorder %s27, %s43
    %p45 = scmp.eq.s32.totalorder %s19, 0
    %p46 = por %p44, %p45
    %s48 = sadd.s32 %s47, 1
    %p51 = scmp.eq.s32.totalorder %s13, 1
    %p52 = scmp.ne.s32.totalorder %s47, %s49
    %p53 = scmp.eq.s32.totalorder %s13, 0
    %p54 = por %p52, %p53
    %p55 = scmp.ne.s32.totalorder %s47, %s49
    %p56 = scmp.eq.s32.totalorder %s18, 1
    %p57 = por %p55, %p56
    %p58 = scmp.ne.s32.totalorder %s49, %s50
    %p59 = scmp.eq.s32.totalorder %s18, 0
    %p60 = por %p58, %p59
    %p61 = scmp.ne.s32.totalorder %s49, %s50
    %p62 = scmp.eq.s32.totalorder %s19, 1
    %p63 = por %p61, %p62
    %p65 = scmp.ne.s32.totalorder %s50, %s64
    %p66 = scmp.eq.s32.totalorder %s19, 0
    %p67 = por %p65, %p66
    %s69 = sadd.s32 %s68, 1
    %p72 = scmp.eq.s32.totalorder %s13, 1
    %p73 = scmp.ne.s32.totalorder %s68, %s70
    %p74 = scmp.eq.s32.totalorder %s13, 0
    %p75 = por %p73, %p74
    %p76 = scmp.ne.s32.totalorder %s68, %s70
    %p77 = scmp.eq.s32.totalorder %s18, 1
    %p78 = por %p76, %p77
    %p79 = scmp.ne.s32.totalorder %s70, %s71
    %p80 = scmp.eq.s32.totalorder %s18, 0
    %p81 = por %p79, %p80
    %p82 = scmp.ne.s32.totalorder %s70, %s71
    %p83 = scmp.eq.s32.totalorder %s19, 1
    %p84 = por %p82, %p83
    %p86 = scmp.ne.s32.totalorder %s71, %s85
    %p87 = scmp.eq.s32.totalorder %s19, 0
    %p88 = por %p86, %p87
    %s90 = sadd.s32 %s89, 1
    %p93 = scmp.eq.s32.totalorder %s13, 1
    %p94 = scmp.ne.s32.totalorder %s89, %s91
    %p95 = scmp.eq.s32.totalorder %s13, 0
    %p96 = por %p94, %p95
    %p97 = scmp.ne.s32.totalorder %s89, %s91
    %p98 = scmp.eq.s32.totalorder %s18, 1
    %p99 = por %p97, %p98
    %p100 = scmp.ne.s32.totalorder %s91, %s92
    %p101 = scmp.eq.s32.totalorder %s18, 0
    %p102 = por %p100, %p101
    %p103 = scmp.ne.s32.totalorder %s91, %s92
    %p104 = scmp.eq.s32.totalorder %s19, 1
    %p105 = por %p103, %p104
    %p107 = scmp.ne.s32.totalorder %s92, %s106
    %p108 = scmp.eq.s32.totalorder %s19, 0
    %p109 = por %p107, %p108
    %s110 = ssub.s32 %s13, %s20
    %p111 = scmp.eq.s32.totalorder %s110, 0
    %s113 = sadd.s32 %s112, 1
    %s114 = scalar_select %p111, %s112, %s113
    %p117 = pneg %p111
    %p118 = scmp.eq.s32.totalorder %s13, 1
    %p119 = por %p117, %p118
    %p120 = scmp.ne.s32.totalorder %s112, %s115
    %p121 = scmp.eq.s32.totalorder %s13, 0
    %p122 = por %p120, %p121
    %p123 = scmp.ne.s32.totalorder %s112, %s115
    %p124 = scmp.eq.s32.totalorder %s18, 1
    %p125 = por %p123, %p124
    %p126 = scmp.ne.s32.totalorder %s115, %s116
    %p127 = scmp.eq.s32.totalorder %s18, 0
    %p128 = por %p126, %p127
    %p129 = scmp.ne.s32.totalorder %s115, %s116
    %p130 = scmp.eq.s32.totalorder %s19, 1
    %p131 = por %p129, %p130
    %p133 = scmp.ne.s32.totalorder %s116, %s132
    %p134 = scmp.eq.s32.totalorder %s19, 0
    %p135 = por %p133, %p134
    %s136 = ssub.s32 %s13, %s20
    %p137 = scmp.eq.s32.totalorder %s136, 0
    %s139 = sadd.s32 %s138, 1
    %s140 = scalar_select %p137, %s138, %s139
    %p143 = pneg %p137
    %p144 = scmp.eq.s32.totalorder %s13, 1
    %p145 = por %p143, %p144
    %p146 = scmp.ne.s32.totalorder %s138, %s141
    %p147 = scmp.eq.s32.totalorder %s13, 0
    %p148 = por %p146, %p147
    %p149 = scmp.ne.s32.totalorder %s138, %s141
    %p150 = scmp.eq.s32.totalorder %s18, 1
    %p151 = por %p149, %p150
    %p152 = scmp.ne.s32.totalorder %s141, %s142
    %p153 = scmp.eq.s32.totalorder %s18, 0
    %p154 = por %p152, %p153
    %p155 = scmp.ne.s32.totalorder %s141, %s142
    %p156 = scmp.eq.s32.totalorder %s19, 1
    %p157 = por %p155, %p156
    %p159 = scmp.ne.s32.totalorder %s142, %s158
    %p160 = scmp.eq.s32.totalorder %s19, 0
    %p161 = por %p159, %p160
    %s162 = ssub.s32 %s13, %s20
    %p163 = scmp.eq.s32.totalorder %s162, 0
    %s165 = sadd.s32 %s164, 1
    %s166 = scalar_select %p163, %s164, %s165
    %p169 = pneg %p163
    %p170 = scmp.eq.s32.totalorder %s13, 1
    %p171 = por %p169, %p170
    %p172 = scmp.ne.s32.totalorder %s164, %s167
    %p173 = scmp.eq.s32.totalorder %s13, 0
    %p174 = por %p172, %p173
    %p175 = scmp.ne.s32.totalorder %s164, %s167
    %p176 = scmp.eq.s32.totalorder %s18, 1
    %p177 = por %p175, %p176
    %p178 = scmp.ne.s32.totalorder %s167, %s168
    %p179 = scmp.eq.s32.totalorder %s18, 0
    %p180 = por %p178, %p179
    %p181 = scmp.ne.s32.totalorder %s167, %s168
    %p182 = scmp.eq.s32.totalorder %s19, 1
    %p183 = por %p181, %p182
    %p185 = scmp.ne.s32.totalorder %s168, %s184
    %p186 = scmp.eq.s32.totalorder %s19, 0
    %p187 = por %p185, %p186
    %p188 = scmp.le.s32.totalorder 1, %s13
    %p189 = scmp.lt.s32.totalorder %s13, 3
    %p190 = pnand %p188, %p189
    %p191 = pneg %p190
    // Predicated region
    $region9: #{up_forward.2} parent=5 // pred_check
      _
    $region10: #{up_forward.2} parent=5 // pred_check_branch
      %193 = sbr.rel (%p190) target = $region12
    $region11: #{up_forward.2} parent=5 // pred_region
      %s194 = ssub.s32 %s13, 1
      // Predicated region
      $region13: #{up_forward.2} parent=11 // pred_check
        %p195 = pneg %p60
      $region14: #{up_forward.2} parent=11 // pred_check_branch
        %197 = sbr.rel (%p195) target = $region16
      $region15: #{up_forward.2} parent=11 // pred_region
        _
      $region16: #{up_forward.2} parent=11 // pred_fallthru
        _
      // Predicated region
      $region17: #{up_forward.2} parent=11 // pred_check
        %p198 = pneg %p81
      $region18: #{up_forward.2} parent=11 // pred_check_branch
        %200 = sbr.rel (%p198) target = $region20
      $region19: #{up_forward.2} parent=11 // pred_region
        _
      $region20: #{up_forward.2} parent=11 // pred_fallthru
        _
      // Predicated region
      $region21: #{up_forward.2} parent=11 // pred_check
        %p201 = pneg %p102
      $region22: #{up_forward.2} parent=11 // pred_check_branch
        %203 = sbr.rel (%p201) target = $region24
      $region23: #{up_forward.2} parent=11 // pred_region
        _
      $region24: #{up_forward.2} parent=11 // pred_fallthru
        _
    $region12: #{up_forward.2} parent=5 // pred_fallthru
      _
    %p204 = scmp.lt.s32.totalorder %s13, 2
    // Predicated region
    $region25: #{up_forward.2} parent=5 // pred_check
      %p205 = pneg %p204
    $region26: #{up_forward.2} parent=5 // pred_check_branch
      %207 = sbr.rel (%p205) target = $region28
    $region27: #{up_forward.2} parent=5 // pred_region
      // Predicated region
      $region29: #{up_forward.2} parent=27 // pred_check
        %p208 = pneg %p33
      $region30: #{up_forward.2} parent=27 // pred_check_branch
        %210 = sbr.rel (%p208) target = $region32
      $region31: #{up_forward.2} parent=27 // pred_region
        %p211 = scmp.lt.s32.totalorder %s13, 1
        %s212 = scalar_select %p211, %s13, 1
        %s213 = smul.addr %s212, 2
        %s214 = smul.addr %s213, 8
        %s215 = scalar_lea.vmem %s0, %s214
      $region32: #{up_forward.2} parent=27 // pred_fallthru
        _
    $region28: #{up_forward.2} parent=5 // pred_fallthru
      _
    %p216 = scmp.le.s32.totalorder 1, %s13
    %p217 = scmp.lt.s32.totalorder %s13, 3
    %p218 = pnand %p216, %p217
    %p219 = pneg %p218
    // Predicated region
    $region33: #{up_forward.2} parent=5 // pred_check
      _
    $region34: #{up_forward.2} parent=5 // pred_check_branch
      %221 = sbr.rel (%p218) target = $region36
    $region35: #{up_forward.2} parent=5 // pred_region
      %s222 = ssub.s32 %s13, 1
      %p223 = scmp.lt.s32.totalorder %s18, 1
      %s224 = scalar_select %p223, %s18, 1
      %s225 = smul.addr %s224, 2
      %s226 = smul.addr %s225, 8
      %s227 = scalar_lea.vmem %s0, %s226
      %p228 = pneg %p39
      %p229 = pneg %p36
      %p230 = pneg %p60
      %p231 = pneg %p57
      %p232 = pneg %p81
      %p233 = pneg %p78
      %p234 = pneg %p102
      %p235 = pneg %p99
      %p236 = pneg %p128
      %p237 = pneg %p125
      %s238 = smul.u32 4, %s18
      %p239 = scmp.lt.s32.totalorder %s238, 7
      %s240 = scalar_select %p239, %s238, 7
      %s241 = smul.addr %s240, 2
      %s242 = smul.addr %s241, 8
      %s243 = scalar_lea.vmem %s4, %s242
      %p244 = pneg %p154
      %p245 = pneg %p151
      %p246 = scmp.lt.s32.totalorder %s18, 1
      %s247 = scalar_select %p246, %s18, 1
      %s248 = smul.addr %s247, 2
      %s249 = scalar_lea.vmem %s5, %s248
      %p250 = pneg %p180
      %p251 = pneg %p177
      %p252 = scmp.lt.s32.totalorder %s18, 1
      %s253 = scalar_select %p252, %s18, 1
      %s254 = smul.addr %s253, 2
      %s255 = scalar_lea.vmem %s6, %s254
      %p256 = scmp.lt.s32.totalorder %s18, 1
      %s257 = scalar_select %p256, %s18, 1
      %s258 = smul.addr %s257, 2
      %s259 = smul.addr %s258, 8
      %s260 = scalar_lea.vmem %s0, %s259
      %s261 = smul.u32 4, %s18
      %p262 = scmp.lt.s32.totalorder %s261, 7
      %s263 = scalar_select %p262, %s261, 7
      %s264 = smul.addr %s263, 2
      %s265 = smul.addr %s264, 8
      %s266 = scalar_lea.vmem %s4, %s265
      %s267 = smul.u32 4, %s18
      %p268 = scmp.lt.s32.totalorder %s18, 1
      %s269 = scalar_select %p268, %s18, 1
      %s270 = smul.addr %s269, 2
      %s271 = scalar_lea.vmem %s5, %s270
      %p272 = scmp.lt.s32.totalorder %s18, 1
      %s273 = scalar_select %p272, %s18, 1
      %s274 = smul.addr %s273, 2
      %s275 = scalar_lea.vmem %s6, %s274
      %v276 = vld [vmem:[%s260] sm:$0xff]
      %v277 = vld [vmem:[%s260 + $0x8] sm:$0xff]
      %v278 = vld [vmem:[%s1] sm:$0xff]
      %v279 = vld [vmem:[%s1 + $0x8] sm:$0xff]
      %v280 = vld [vmem:[%s1 + $0x10] sm:$0xff]
      %v281 = vld [vmem:[%s1 + $0x18] sm:$0xff]
      %vm282 = vcmask 130048
      %v284 = vsel %vm282, %v278, 0
      %v287 = vsel %vm282, %v279, 0
      %v290 = vsel %vm282, %v280, 0
      %v293 = vsel %vm282, %v281, 0
      %295 = vmatprep.subr.mxu0 0.0
      %296 = vmatpush1.msra.mxu0 0.0
      %297 = vmatprep.subr.mxu0 0.0
      %298 = vmatpush1.msra.mxu0 0.0
      %299 = vmatprep.subr.mxu0 0.0
      %300 = vmatpush1.msra.mxu0 0.0
      %301 = vmatprep.subr.mxu0 0.0
      %302 = vmatpush1.msra.mxu0 0.0
      %303 = vmatprep.subr.mxu0 0.0
      %304 = vmatpush1.msra.mxu0 0.0
      %305 = vmatprep.subr.mxu0 0.0
      %306 = vmatpush1.msra.mxu0 0.0
      %307 = vmatprep.subr.mxu0 0.0
      %308 = vmatpush1.msra.mxu0 0.0
      %309 = vmatprep.subr.mxu0 0.0
      %310 = vmatpush1.msra.mxu0 0.0
      %311 = vmatprep.subr.mxu0 0.0
      %312 = vmatpush1.msra.mxu0 0.0
      %313 = vmatprep.subr.mxu0 0.0
      %314 = vmatpush1.msra.mxu0 0.0
      %315 = vmatprep.subr.mxu0 0.0
      %316 = vmatpush1.msra.mxu0 0.0
      %317 = vmatprep.subr.mxu0 0.0
      %318 = vmatpush1.msra.mxu0 0.0
      %319 = vmatprep.subr.mxu0 0.0
      %320 = vmatpush1.msra.mxu0 0.0
      %321 = vmatprep.subr.mxu0 0.0
      %322 = vmatpush1.msra.mxu0 0.0
      %323 = vmatprep.subr.mxu0 0.0
      %324 = vmatpush1.msra.mxu0 %v277
      %325 = vmatprep.subr.mxu0 0.0
      %326 = vmatpush1.msra.mxu0 %v276
      %327 = vmatprep.subr.mxu0 0.0
      %328 = vmatpush2.msra.mxu0 0.0
      %329 = vmatprep.subr.mxu0 0.0
      %330 = vmatpush2.msra.mxu0 0.0
      %331 = vmatprep.subr.mxu0 0.0
      %332 = vmatpush2.msra.mxu0 0.0
      %333 = vmatprep.subr.mxu0 0.0
      %334 = vmatpush2.msra.mxu0 0.0
      %335 = vmatprep.subr.mxu0 0.0
      %336 = vmatpush2.msra.mxu0 0.0
      %337 = vmatprep.subr.mxu0 0.0
      %338 = vmatpush2.msra.mxu0 0.0
      %339 = vmatprep.subr.mxu0 0.0
      %340 = vmatpush2.msra.mxu0 0.0
      %341 = vmatprep.subr.mxu0 0.0
      %342 = vmatpush2.msra.mxu0 0.0
      %343 = vmatprep.subr.mxu0 0.0
      %344 = vmatpush2.msra.mxu0 0.0
      %345 = vmatprep.subr.mxu0 0.0
      %346 = vmatpush2.msra.mxu0 0.0
      %347 = vmatprep.subr.mxu0 0.0
      %348 = vmatpush2.msra.mxu0 0.0
      %349 = vmatprep.subr.mxu0 0.0
      %350 = vmatpush2.msra.mxu0 0.0
      %351 = vmatprep.subr.mxu0 0.0
      %352 = vmatpush2.msra.mxu0 0.0
      %353 = vmatprep.subr.mxu0 0.0
      %354 = vmatpush2.msra.mxu0 0.0
      %355 = vmatprep.subr.mxu0 0.0
      %356 = vmatpush2.msra.mxu0 0.0
      %357 = vmatprep.subr.mxu0 0.0
      %358 = vmatpush2.msra.mxu0 0.0
      %359 = vmatprep.mubr.f32.mxu0 0.0
      %360 = vmatmul.mubr.f32.gmra.mxu0 %v284
      %v361 = vpop.f32.mrf.mxu0
      %v362 = vadd.f32 0.0, %v361
      %v363 = vpop.f32.mrf.mxu0
      %364 = vmatprep.mubr.f32.mxu0 0.0
      %365 = vmatmul.mubr.f32.gmra.mxu0 %v287
      %v366 = vpop.f32.mrf.mxu0
      %v367 = vadd.f32 0.0, %v366
      %v368 = vpop.f32.mrf.mxu0
      %369 = vmatprep.mubr.f32.mxu0 0.0
      %370 = vmatmul.mubr.f32.gmra.mxu0 %v290
      %v371 = vpop.f32.mrf.mxu0
      %v372 = vadd.f32 0.0, %v371
      %v373 = vpop.f32.mrf.mxu0
      %374 = vmatprep.mubr.f32.mxu0 0.0
      %375 = vmatmul.mubr.f32.gmra.mxu0 %v293
      %v376 = vpop.f32.mrf.mxu0
      %v377 = vadd.f32 0.0, %v376
      %v378 = vpop.f32.mrf.mxu0
      %379 = vdwg.mxu0
      %v380 = vld [vmem:[%s2] sm:$0xff]
      %v381 = vld [vmem:[%s2 + $0x8] sm:$0xff]
      %v382 = vld [vmem:[%s2 + $0x10] sm:$0xff]
      %v383 = vld [vmem:[%s2 + $0x18] sm:$0xff]
      %v384 = vld [vmem:[%s2 + $0x20] sm:$0xff]
      %v385 = vld [vmem:[%s2 + $0x28] sm:$0xff]
      %v386 = vld [vmem:[%s2 + $0x30] sm:$0xff]
      %v387 = vld [vmem:[%s2 + $0x38] sm:$0xff]
      %v388 = vld [vmem:[%s2 + $0x40] sm:$0xff]
      %v389 = vld [vmem:[%s2 + $0x48] sm:$0xff]
      %v390 = vld [vmem:[%s2 + $0x50] sm:$0xff]
      %v391 = vld [vmem:[%s2 + $0x58] sm:$0xff]
      %v392 = vld [vmem:[%s2 + $0x60] sm:$0xff]
      %v393 = vld [vmem:[%s2 + $0x68] sm:$0xff]
      %v394 = vld [vmem:[%s2 + $0x70] sm:$0xff]
      %v395 = vld [vmem:[%s2 + $0x78] sm:$0xff]
      %s396 = scalar_lea.vmem %s1, 32
      %v397 = vld [vmem:[%s396] sm:$0xff]
      %v398 = vld [vmem:[%s396 + $0x8] sm:$0xff]
      %v399 = vld [vmem:[%s396 + $0x10] sm:$0xff]
      %v400 = vld [vmem:[%s396 + $0x18] sm:$0xff]
      %v402 = vsel %vm282, %v397, 0
      %v405 = vsel %vm282, %v398, 0
      %v408 = vsel %vm282, %v399, 0
      %v411 = vsel %vm282, %v400, 0
      %413 = vmatprep.subr.mxu0 0.0
      %414 = vmatpush1.msra.mxu0 0.0
      %415 = vmatprep.subr.mxu0 0.0
      %416 = vmatpush1.msra.mxu0 0.0
      %417 = vmatprep.subr.mxu0 0.0
      %418 = vmatpush1.msra.mxu0 0.0
      %419 = vmatprep.subr.mxu0 0.0
      %420 = vmatpush1.msra.mxu0 0.0
      %421 = vmatprep.subr.mxu0 0.0
      %422 = vmatpush1.msra.mxu0 0.0
      %423 = vmatprep.subr.mxu0 0.0
      %424 = vmatpush1.msra.mxu0 0.0
      %425 = vmatprep.subr.mxu0 0.0
      %426 = vmatpush1.msra.mxu0 0.0
      %427 = vmatprep.subr.mxu0 0.0
      %428 = vmatpush1.msra.mxu0 0.0
      %429 = vmatprep.subr.mxu0 0.0
      %430 = vmatpush1.msra.mxu0 0.0
      %431 = vmatprep.subr.mxu0 0.0
      %432 = vmatpush1.msra.mxu0 0.0
      %433 = vmatprep.subr.mxu0 0.0
      %434 = vmatpush1.msra.mxu0 0.0
      %435 = vmatprep.subr.mxu0 0.0
      %436 = vmatpush1.msra.mxu0 0.0
      %437 = vmatprep.subr.mxu0 0.0
      %438 = vmatpush1.msra.mxu0 0.0
      %439 = vmatprep.subr.mxu0 0.0
      %440 = vmatpush1.msra.mxu0 0.0
      %441 = vmatprep.subr.mxu0 0.0
      %442 = vmatpush1.msra.mxu0 %v277
      %443 = vmatprep.subr.mxu0 0.0
      %444 = vmatpush1.msra.mxu0 %v276
      %445 = vmatprep.subr.mxu0 0.0
      %446 = vmatpush2.msra.mxu0 0.0
      %447 = vmatprep.subr.mxu0 0.0
      %448 = vmatpush2.msra.mxu0 0.0
      %449 = vmatprep.subr.mxu0 0.0
      %450 = vmatpush2.msra.mxu0 0.0
      %451 = vmatprep.subr.mxu0 0.0
      %452 = vmatpush2.msra.mxu0 0.0
      %453 = vmatprep.subr.mxu0 0.0
      %454 = vmatpush2.msra.mxu0 0.0
      %455 = vmatprep.subr.mxu0 0.0
      %456 = vmatpush2.msra.mxu0 0.0
      %457 = vmatprep.subr.mxu0 0.0
      %458 = vmatpush2.msra.mxu0 0.0
      %459 = vmatprep.subr.mxu0 0.0
      %460 = vmatpush2.msra.mxu0 0.0
      %461 = vmatprep.subr.mxu0 0.0
      %462 = vmatpush2.msra.mxu0 0.0
      %463 = vmatprep.subr.mxu0 0.0
      %464 = vmatpush2.msra.mxu0 0.0
      %465 = vmatprep.subr.mxu0 0.0
      %466 = vmatpush2.msra.mxu0 0.0
      %467 = vmatprep.subr.mxu0 0.0
      %468 = vmatpush2.msra.mxu0 0.0
      %469 = vmatprep.subr.mxu0 0.0
      %470 = vmatpush2.msra.mxu0 0.0
      %471 = vmatprep.subr.mxu0 0.0
      %472 = vmatpush2.msra.mxu0 0.0
      %473 = vmatprep.subr.mxu0 0.0
      %474 = vmatpush2.msra.mxu0 0.0
      %475 = vmatprep.subr.mxu0 0.0
      %476 = vmatpush2.msra.mxu0 0.0
      %477 = vmatprep.mubr.f32.mxu0 0.0
      %478 = vmatmul.mubr.f32.gmra.mxu0 %v402
      %v479 = vpop.f32.mrf.mxu0
      %v480 = vadd.f32 0.0, %v479
      %v481 = vpop.f32.mrf.mxu0
      %482 = vmatprep.mubr.f32.mxu0 0.0
      %483 = vmatmul.mubr.f32.gmra.mxu0 %v405
      %v484 = vpop.f32.mrf.mxu0
      %v485 = vadd.f32 0.0, %v484
      %v486 = vpop.f32.mrf.mxu0
      %487 = vmatprep.mubr.f32.mxu0 0.0
      %488 = vmatmul.mubr.f32.gmra.mxu0 %v408
      %v489 = vpop.f32.mrf.mxu0
      %v490 = vadd.f32 0.0, %v489
      %v491 = vpop.f32.mrf.mxu0
      %492 = vmatprep.mubr.f32.mxu0 0.0
      %493 = vmatmul.mubr.f32.gmra.mxu0 %v411
      %v494 = vpop.f32.mrf.mxu0
      %v495 = vadd.f32 0.0, %v494
      %v496 = vpop.f32.mrf.mxu0
      %497 = vdwg.mxu0
      %s498 = scalar_lea.vmem %s2, 128
      %v499 = vld [vmem:[%s498] sm:$0xff]
      %v500 = vld [vmem:[%s498 + $0x8] sm:$0xff]
      %v501 = vld [vmem:[%s498 + $0x10] sm:$0xff]
      %v502 = vld [vmem:[%s498 + $0x18] sm:$0xff]
      %v503 = vld [vmem:[%s498 + $0x20] sm:$0xff]
      %v504 = vld [vmem:[%s498 + $0x28] sm:$0xff]
      %v505 = vld [vmem:[%s498 + $0x30] sm:$0xff]
      %v506 = vld [vmem:[%s498 + $0x38] sm:$0xff]
      %v507 = vld [vmem:[%s498 + $0x40] sm:$0xff]
      %v508 = vld [vmem:[%s498 + $0x48] sm:$0xff]
      %v509 = vld [vmem:[%s498 + $0x50] sm:$0xff]
      %v510 = vld [vmem:[%s498 + $0x58] sm:$0xff]
      %v511 = vld [vmem:[%s498 + $0x60] sm:$0xff]
      %v512 = vld [vmem:[%s498 + $0x68] sm:$0xff]
      %v513 = vld [vmem:[%s498 + $0x70] sm:$0xff]
      %v514 = vld [vmem:[%s498 + $0x78] sm:$0xff]
      %vm515 = vcmask 523264
      %v517 = vsel %vm515, %v480, 0
      %v520 = vsel %vm515, %v485, 0
      %v523 = vsel %vm515, %v490, 0
      %v526 = vsel %vm515, %v495, 0
      %528 = vmatprep.subr.mxu0 0.0
      %529 = vmatpush1.msra.mxu0 0.0
      %530 = vmatprep.subr.mxu0 0.0
      %531 = vmatpush1.msra.mxu0 0.0
      %532 = vmatprep.subr.mxu0 0.0
      %533 = vmatpush1.msra.mxu0 0.0
      %534 = vmatprep.subr.mxu0 0.0
      %535 = vmatpush1.msra.mxu0 0.0
      %536 = vmatprep.subr.mxu0 0.0
      %537 = vmatpush1.msra.mxu0 0.0
      %538 = vmatprep.subr.mxu0 0.0
      %539 = vmatpush1.msra.mxu0 0.0
      %540 = vmatprep.subr.mxu0 0.0
      %541 = vmatpush1.msra.mxu0 0.0
      %542 = vmatprep.subr.mxu0 0.0
      %543 = vmatpush1.msra.mxu0 0.0
      %544 = vmatprep.subr.mxu0 %v514
      %545 = vmatpush1.msra.mxu0 %v513
      %546 = vmatprep.subr.mxu0 %v512
      %547 = vmatpush1.msra.mxu0 %v511
      %548 = vmatprep.subr.mxu0 %v510
      %549 = vmatpush1.msra.mxu0 %v509
      %550 = vmatprep.subr.mxu0 %v508
      %551 = vmatpush1.msra.mxu0 %v507
      %552 = vmatprep.subr.mxu0 %v506
      %553 = vmatpush1.msra.mxu0 %v505
      %554 = vmatprep.subr.mxu0 %v504
      %555 = vmatpush1.msra.mxu0 %v503
      %556 = vmatprep.subr.mxu0 %v502
      %557 = vmatpush1.msra.mxu0 %v501
      %558 = vmatprep.subr.mxu0 %v500
      %559 = vmatpush1.msra.mxu0 %v499
      %560 = vmatprep.subr.mxu0 0.0
      %561 = vmatpush2.msra.mxu0 0.0
      %562 = vmatprep.subr.mxu0 0.0
      %563 = vmatpush2.msra.mxu0 0.0
      %564 = vmatprep.subr.mxu0 0.0
      %565 = vmatpush2.msra.mxu0 0.0
      %566 = vmatprep.subr.mxu0 0.0
      %567 = vmatpush2.msra.mxu0 0.0
      %568 = vmatprep.subr.mxu0 0.0
      %569 = vmatpush2.msra.mxu0 0.0
      %570 = vmatprep.subr.mxu0 0.0
      %571 = vmatpush2.msra.mxu0 0.0
      %572 = vmatprep.subr.mxu0 0.0
      %573 = vmatpush2.msra.mxu0 0.0
      %574 = vmatprep.subr.mxu0 0.0
      %575 = vmatpush2.msra.mxu0 0.0
      %576 = vmatprep.subr.mxu0 0.0
      %577 = vmatpush2.msra.mxu0 0.0
      %578 = vmatprep.subr.mxu0 0.0
      %579 = vmatpush2.msra.mxu0 0.0
      %580 = vmatprep.subr.mxu0 0.0
      %581 = vmatpush2.msra.mxu0 0.0
      %582 = vmatprep.subr.mxu0 0.0
      %583 = vmatpush2.msra.mxu0 0.0
      %584 = vmatprep.subr.mxu0 0.0
      %585 = vmatpush2.msra.mxu0 0.0
      %586 = vmatprep.subr.mxu0 0.0
      %587 = vmatpush2.msra.mxu0 0.0
      %588 = vmatprep.subr.mxu0 0.0
      %589 = vmatpush2.msra.mxu0 0.0
      %590 = vmatprep.subr.mxu0 0.0
      %591 = vmatpush2.msra.mxu0 0.0
      %592 = vmatprep.mubr.f32.mxu0 0.0
      %593 = vmatmul.mubr.f32.gmra.mxu0 %v517
      %v594 = vpop.f32.mrf.mxu0
      %v595 = vadd.f32 0.0, %v594
      %v596 = vpop.f32.mrf.mxu0
      %v597 = vadd.f32 0.0, %v596
      %598 = vmatprep.mubr.f32.mxu0 0.0
      %599 = vmatmul.mubr.f32.gmra.mxu0 %v520
      %v600 = vpop.f32.mrf.mxu0
      %v601 = vadd.f32 0.0, %v600
      %v602 = vpop.f32.mrf.mxu0
      %v603 = vadd.f32 0.0, %v602
      %604 = vmatprep.mubr.f32.mxu0 0.0
      %605 = vmatmul.mubr.f32.gmra.mxu0 %v523
      %v606 = vpop.f32.mrf.mxu0
      %v607 = vadd.f32 0.0, %v606
      %v608 = vpop.f32.mrf.mxu0
      %v609 = vadd.f32 0.0, %v608
      %610 = vmatprep.mubr.f32.mxu0 0.0
      %611 = vmatmul.mubr.f32.gmra.mxu0 %v526
      %v612 = vpop.f32.mrf.mxu0
      %v613 = vadd.f32 0.0, %v612
      %v614 = vpop.f32.mrf.mxu0
      %v615 = vadd.f32 0.0, %v614
      %616 = vdwg.mxu0
      %v618 = vsel %vm515, %v362, 0
      %v621 = vsel %vm515, %v367, 0
      %v624 = vsel %vm515, %v372, 0
      %v627 = vsel %vm515, %v377, 0
      %629 = vmatprep.subr.mxu0 0.0
      %630 = vmatpush1.msra.mxu0 0.0
      %631 = vmatprep.subr.mxu0 0.0
      %632 = vmatpush1.msra.mxu0 0.0
      %633 = vmatprep.subr.mxu0 0.0
      %634 = vmatpush1.msra.mxu0 0.0
      %635 = vmatprep.subr.mxu0 0.0
      %636 = vmatpush1.msra.mxu0 0.0
      %637 = vmatprep.subr.mxu0 0.0
      %638 = vmatpush1.msra.mxu0 0.0
      %639 = vmatprep.subr.mxu0 0.0
      %640 = vmatpush1.msra.mxu0 0.0
      %641 = vmatprep.subr.mxu0 0.0
      %642 = vmatpush1.msra.mxu0 0.0
      %643 = vmatprep.subr.mxu0 0.0
      %644 = vmatpush1.msra.mxu0 0.0
      %645 = vmatprep.subr.mxu0 %v395
      %646 = vmatpush1.msra.mxu0 %v394
      %647 = vmatprep.subr.mxu0 %v393
      %648 = vmatpush1.msra.mxu0 %v392
      %649 = vmatprep.subr.mxu0 %v391
      %650 = vmatpush1.msra.mxu0 %v390
      %651 = vmatprep.subr.mxu0 %v389
      %652 = vmatpush1.msra.mxu0 %v388
      %653 = vmatprep.subr.mxu0 %v387
      %654 = vmatpush1.msra.mxu0 %v386
      %655 = vmatprep.subr.mxu0 %v385
      %656 = vmatpush1.msra.mxu0 %v384
      %657 = vmatprep.subr.mxu0 %v383
      %658 = vmatpush1.msra.mxu0 %v382
      %659 = vmatprep.subr.mxu0 %v381
      %660 = vmatpush1.msra.mxu0 %v380
      %661 = vmatprep.subr.mxu0 0.0
      %662 = vmatpush2.msra.mxu0 0.0
      %663 = vmatprep.subr.mxu0 0.0
      %664 = vmatpush2.msra.mxu0 0.0
      %665 = vmatprep.subr.mxu0 0.0
      %666 = vmatpush2.msra.mxu0 0.0
      %667 = vmatprep.subr.mxu0 0.0
      %668 = vmatpush2.msra.mxu0 0.0
      %669 = vmatprep.subr.mxu0 0.0
      %670 = vmatpush2.msra.mxu0 0.0
      %671 = vmatprep.subr.mxu0 0.0
      %672 = vmatpush2.msra.mxu0 0.0
      %673 = vmatprep.subr.mxu0 0.0
      %674 = vmatpush2.msra.mxu0 0.0
      %675 = vmatprep.subr.mxu0 0.0
      %676 = vmatpush2.msra.mxu0 0.0
      %677 = vmatprep.subr.mxu0 0.0
      %678 = vmatpush2.msra.mxu0 0.0
      %679 = vmatprep.subr.mxu0 0.0
      %680 = vmatpush2.msra.mxu0 0.0
      %681 = vmatprep.subr.mxu0 0.0
      %682 = vmatpush2.msra.mxu0 0.0
      %683 = vmatprep.subr.mxu0 0.0
      %684 = vmatpush2.msra.mxu0 0.0
      %685 = vmatprep.subr.mxu0 0.0
      %686 = vmatpush2.msra.mxu0 0.0
      %687 = vmatprep.subr.mxu0 0.0
      %688 = vmatpush2.msra.mxu0 0.0
      %689 = vmatprep.subr.mxu0 0.0
      %690 = vmatpush2.msra.mxu0 0.0
      %691 = vmatprep.subr.mxu0 0.0
      %692 = vmatpush2.msra.mxu0 0.0
      %693 = vmatprep.mubr.f32.mxu0 0.0
      %694 = vmatmul.mubr.f32.gmra.mxu0 %v618
      %v695 = vpop.f32.mrf.mxu0
      %v696 = vadd.f32 %v595, %v695
      %v697 = vpop.f32.mrf.mxu0
      %v698 = vadd.f32 %v597, %v697
      %699 = vmatprep.mubr.f32.mxu0 0.0
      %700 = vmatmul.mubr.f32.gmra.mxu0 %v621
      %v701 = vpop.f32.mrf.mxu0
      %v702 = vadd.f32 %v601, %v701
      %v703 = vpop.f32.mrf.mxu0
      %v704 = vadd.f32 %v603, %v703
      %705 = vmatprep.mubr.f32.mxu0 0.0
      %706 = vmatmul.mubr.f32.gmra.mxu0 %v624
      %v707 = vpop.f32.mrf.mxu0
      %v708 = vadd.f32 %v607, %v707
      %v709 = vpop.f32.mrf.mxu0
      %v710 = vadd.f32 %v609, %v709
      %711 = vmatprep.mubr.f32.mxu0 0.0
      %712 = vmatmul.mubr.f32.gmra.mxu0 %v627
      %v713 = vpop.f32.mrf.mxu0
      %v714 = vadd.f32 %v613, %v713
      %v715 = vpop.f32.mrf.mxu0
      %v716 = vadd.f32 %v615, %v715
      %717 = vdwg.mxu0
      %s718 = scalar_lea.vmem %s1, 64
      %v719 = vld [vmem:[%s718] sm:$0xff]
      %v720 = vld [vmem:[%s718 + $0x8] sm:$0xff]
      %v721 = vld [vmem:[%s718 + $0x10] sm:$0xff]
      %v722 = vld [vmem:[%s718 + $0x18] sm:$0xff]
      %v724 = vsel %vm282, %v719, 0
      %v727 = vsel %vm282, %v720, 0
      %v730 = vsel %vm282, %v721, 0
      %v733 = vsel %vm282, %v722, 0
      %735 = vmatprep.subr.mxu0 0.0
      %736 = vmatpush1.msra.mxu0 0.0
      %737 = vmatprep.subr.mxu0 0.0
      %738 = vmatpush1.msra.mxu0 0.0
      %739 = vmatprep.subr.mxu0 0.0
      %740 = vmatpush1.msra.mxu0 0.0
      %741 = vmatprep.subr.mxu0 0.0
      %742 = vmatpush1.msra.mxu0 0.0
      %743 = vmatprep.subr.mxu0 0.0
      %744 = vmatpush1.msra.mxu0 0.0
      %745 = vmatprep.subr.mxu0 0.0
      %746 = vmatpush1.msra.mxu0 0.0
      %747 = vmatprep.subr.mxu0 0.0
      %748 = vmatpush1.msra.mxu0 0.0
      %749 = vmatprep.subr.mxu0 0.0
      %750 = vmatpush1.msra.mxu0 0.0
      %751 = vmatprep.subr.mxu0 0.0
      %752 = vmatpush1.msra.mxu0 0.0
      %753 = vmatprep.subr.mxu0 0.0
      %754 = vmatpush1.msra.mxu0 0.0
      %755 = vmatprep.subr.mxu0 0.0
      %756 = vmatpush1.msra.mxu0 0.0
      %757 = vmatprep.subr.mxu0 0.0
      %758 = vmatpush1.msra.mxu0 0.0
      %759 = vmatprep.subr.mxu0 0.0
      %760 = vmatpush1.msra.mxu0 0.0
      %761 = vmatprep.subr.mxu0 0.0
      %762 = vmatpush1.msra.mxu0 0.0
      %763 = vmatprep.subr.mxu0 0.0
      %764 = vmatpush1.msra.mxu0 %v277
      %765 = vmatprep.subr.mxu0 0.0
      %766 = vmatpush1.msra.mxu0 %v276
      %767 = vmatprep.subr.mxu0 0.0
      %768 = vmatpush2.msra.mxu0 0.0
      %769 = vmatprep.subr.mxu0 0.0
      %770 = vmatpush2.msra.mxu0 0.0
      %771 = vmatprep.subr.mxu0 0.0
      %772 = vmatpush2.msra.mxu0 0.0
      %773 = vmatprep.subr.mxu0 0.0
      %774 = vmatpush2.msra.mxu0 0.0
      %775 = vmatprep.subr.mxu0 0.0
      %776 = vmatpush2.msra.mxu0 0.0
      %777 = vmatprep.subr.mxu0 0.0
      %778 = vmatpush2.msra.mxu0 0.0
      %779 = vmatprep.subr.mxu0 0.0
      %780 = vmatpush2.msra.mxu0 0.0
      %781 = vmatprep.subr.mxu0 0.0
      %782 = vmatpush2.msra.mxu0 0.0
      %783 = vmatprep.subr.mxu0 0.0
      %784 = vmatpush2.msra.mxu0 0.0
      %785 = vmatprep.subr.mxu0 0.0
      %786 = vmatpush2.msra.mxu0 0.0
      %787 = vmatprep.subr.mxu0 0.0
      %788 = vmatpush2.msra.mxu0 0.0
      %789 = vmatprep.subr.mxu0 0.0
      %790 = vmatpush2.msra.mxu0 0.0
      %791 = vmatprep.subr.mxu0 0.0
      %792 = vmatpush2.msra.mxu0 0.0
      %793 = vmatprep.subr.mxu0 0.0
      %794 = vmatpush2.msra.mxu0 0.0
      %795 = vmatprep.subr.mxu0 0.0
      %796 = vmatpush2.msra.mxu0 0.0
      %797 = vmatprep.subr.mxu0 0.0
      %798 = vmatpush2.msra.mxu0 0.0
      %799 = vmatprep.mubr.f32.mxu0 0.0
      %800 = vmatmul.mubr.f32.gmra.mxu0 %v724
      %v801 = vpop.f32.mrf.mxu0
      %v802 = vadd.f32 0.0, %v801
      %v803 = vpop.f32.mrf.mxu0
      %804 = vmatprep.mubr.f32.mxu0 0.0
      %805 = vmatmul.mubr.f32.gmra.mxu0 %v727
      %v806 = vpop.f32.mrf.mxu0
      %v807 = vadd.f32 0.0, %v806
      %v808 = vpop.f32.mrf.mxu0
      %809 = vmatprep.mubr.f32.mxu0 0.0
      %810 = vmatmul.mubr.f32.gmra.mxu0 %v730
      %v811 = vpop.f32.mrf.mxu0
      %v812 = vadd.f32 0.0, %v811
      %v813 = vpop.f32.mrf.mxu0
      %814 = vmatprep.mubr.f32.mxu0 0.0
      %815 = vmatmul.mubr.f32.gmra.mxu0 %v733
      %v816 = vpop.f32.mrf.mxu0
      %v817 = vadd.f32 0.0, %v816
      %v818 = vpop.f32.mrf.mxu0
      %819 = vdwg.mxu0
      %s820 = scalar_lea.vmem %s2, 256
      %v821 = vld [vmem:[%s820] sm:$0xff]
      %v822 = vld [vmem:[%s820 + $0x8] sm:$0xff]
      %v823 = vld [vmem:[%s820 + $0x10] sm:$0xff]
      %v824 = vld [vmem:[%s820 + $0x18] sm:$0xff]
      %v825 = vld [vmem:[%s820 + $0x20] sm:$0xff]
      %v826 = vld [vmem:[%s820 + $0x28] sm:$0xff]
      %v827 = vld [vmem:[%s820 + $0x30] sm:$0xff]
      %v828 = vld [vmem:[%s820 + $0x38] sm:$0xff]
      %v829 = vld [vmem:[%s820 + $0x40] sm:$0xff]
      %v830 = vld [vmem:[%s820 + $0x48] sm:$0xff]
      %v831 = vld [vmem:[%s820 + $0x50] sm:$0xff]
      %v832 = vld [vmem:[%s820 + $0x58] sm:$0xff]
      %v833 = vld [vmem:[%s820 + $0x60] sm:$0xff]
      %v834 = vld [vmem:[%s820 + $0x68] sm:$0xff]
      %v835 = vld [vmem:[%s820 + $0x70] sm:$0xff]
      %v836 = vld [vmem:[%s820 + $0x78] sm:$0xff]
      %v838 = vsel %vm515, %v802, 0
      %v841 = vsel %vm515, %v807, 0
      %v844 = vsel %vm515, %v812, 0
      %v847 = vsel %vm515, %v817, 0
      %849 = vmatprep.subr.mxu0 0.0
      %850 = vmatpush1.msra.mxu0 0.0
      %851 = vmatprep.subr.mxu0 0.0
      %852 = vmatpush1.msra.mxu0 0.0
      %853 = vmatprep.subr.mxu0 0.0
      %854 = vmatpush1.msra.mxu0 0.0
      %855 = vmatprep.subr.mxu0 0.0
      %856 = vmatpush1.msra.mxu0 0.0
      %857 = vmatprep.subr.mxu0 0.0
      %858 = vmatpush1.msra.mxu0 0.0
      %859 = vmatprep.subr.mxu0 0.0
      %860 = vmatpush1.msra.mxu0 0.0
      %861 = vmatprep.subr.mxu0 0.0
      %862 = vmatpush1.msra.mxu0 0.0
      %863 = vmatprep.subr.mxu0 0.0
      %864 = vmatpush1.msra.mxu0 0.0
      %865 = vmatprep.subr.mxu0 %v836
      %866 = vmatpush1.msra.mxu0 %v835
      %867 = vmatprep.subr.mxu0 %v834
      %868 = vmatpush1.msra.mxu0 %v833
      %869 = vmatprep.subr.mxu0 %v832
      %870 = vmatpush1.msra.mxu0 %v831
      %871 = vmatprep.subr.mxu0 %v830
      %872 = vmatpush1.msra.mxu0 %v829
      %873 = vmatprep.subr.mxu0 %v828
      %874 = vmatpush1.msra.mxu0 %v827
      %875 = vmatprep.subr.mxu0 %v826
      %876 = vmatpush1.msra.mxu0 %v825
      %877 = vmatprep.subr.mxu0 %v824
      %878 = vmatpush1.msra.mxu0 %v823
      %879 = vmatprep.subr.mxu0 %v822
      %880 = vmatpush1.msra.mxu0 %v821
      %881 = vmatprep.subr.mxu0 0.0
      %882 = vmatpush2.msra.mxu0 0.0
      %883 = vmatprep.subr.mxu0 0.0
      %884 = vmatpush2.msra.mxu0 0.0
      %885 = vmatprep.subr.mxu0 0.0
      %886 = vmatpush2.msra.mxu0 0.0
      %887 = vmatprep.subr.mxu0 0.0
      %888 = vmatpush2.msra.mxu0 0.0
      %889 = vmatprep.subr.mxu0 0.0
      %890 = vmatpush2.msra.mxu0 0.0
      %891 = vmatprep.subr.mxu0 0.0
      %892 = vmatpush2.msra.mxu0 0.0
      %893 = vmatprep.subr.mxu0 0.0
      %894 = vmatpush2.msra.mxu0 0.0
      %895 = vmatprep.subr.mxu0 0.0
      %896 = vmatpush2.msra.mxu0 0.0
      %897 = vmatprep.subr.mxu0 0.0
      %898 = vmatpush2.msra.mxu0 0.0
      %899 = vmatprep.subr.mxu0 0.0
      %900 = vmatpush2.msra.mxu0 0.0
      %901 = vmatprep.subr.mxu0 0.0
      %902 = vmatpush2.msra.mxu0 0.0
      %903 = vmatprep.subr.mxu0 0.0
      %904 = vmatpush2.msra.mxu0 0.0
      %905 = vmatprep.subr.mxu0 0.0
      %906 = vmatpush2.msra.mxu0 0.0
      %907 = vmatprep.subr.mxu0 0.0
      %908 = vmatpush2.msra.mxu0 0.0
      %909 = vmatprep.subr.mxu0 0.0
      %910 = vmatpush2.msra.mxu0 0.0
      %911 = vmatprep.subr.mxu0 0.0
      %912 = vmatpush2.msra.mxu0 0.0
      %913 = vmatprep.mubr.f32.mxu0 0.0
      %914 = vmatmul.mubr.f32.gmra.mxu0 %v838
      %v915 = vpop.f32.mrf.mxu0
      %v916 = vadd.f32 0.0, %v915
      %v917 = vpop.f32.mrf.mxu0
      %v918 = vadd.f32 0.0, %v917
      %919 = vmatprep.mubr.f32.mxu0 0.0
      %920 = vmatmul.mubr.f32.gmra.mxu0 %v841
      %v921 = vpop.f32.mrf.mxu0
      %v922 = vadd.f32 0.0, %v921
      %v923 = vpop.f32.mrf.mxu0
      %v924 = vadd.f32 0.0, %v923
      %925 = vmatprep.mubr.f32.mxu0 0.0
      %926 = vmatmul.mubr.f32.gmra.mxu0 %v844
      %v927 = vpop.f32.mrf.mxu0
      %v928 = vadd.f32 0.0, %v927
      %v929 = vpop.f32.mrf.mxu0
      %v930 = vadd.f32 0.0, %v929
      %931 = vmatprep.mubr.f32.mxu0 0.0
      %932 = vmatmul.mubr.f32.gmra.mxu0 %v847
      %v933 = vpop.f32.mrf.mxu0
      %v934 = vadd.f32 0.0, %v933
      %v935 = vpop.f32.mrf.mxu0
      %v936 = vadd.f32 0.0, %v935
      %937 = vdwg.mxu0
      %v938 = vadd.f32 %v696, %v916
      %v939 = vadd.f32 %v698, %v918
      %v940 = vadd.f32 %v702, %v922
      %v941 = vadd.f32 %v704, %v924
      %v942 = vadd.f32 %v708, %v928
      %v943 = vadd.f32 %v710, %v930
      %v944 = vadd.f32 %v714, %v934
      %v945 = vadd.f32 %v716, %v936
      %v946 = vld [vmem:[%s3] sm:$0x3]
      %v948 = vlaneseq
      %v949 = vshrl.u32 %v948, 7
      %v950 = vsub.s32 0, %v949
      %v951 = vrot.slane %v946, %v950
      %v952 = vlaneseq
      %v953 = vshrl.u32 %v952, 7
      %v954 = vsub.s32 1, %v953
      %v955 = vrot.slane %v946, %v954
      %v958 = vadd.f32 %v938, %v951
      %v959 = vadd.f32 %v939, %v955
      %v960 = vadd.f32 %v940, %v951
      %v961 = vadd.f32 %v941, %v955
      %v962 = vadd.f32 %v942, %v951
      %v963 = vadd.f32 %v943, %v955
      %v964 = vadd.f32 %v944, %v951
      %v965 = vadd.f32 %v945, %v955
      %966 = vst [vmem:[%s266] sm:$0xff] %v958
      %967 = vst [vmem:[%s266 + $0x8] sm:$0xff] %v959
      %968 = vst [vmem:[%s266 + $0x10] sm:$0xff] %v960
      %969 = vst [vmem:[%s266 + $0x18] sm:$0xff] %v961
      %970 = vst [vmem:[%s266 + $0x20] sm:$0xff] %v962
      %971 = vst [vmem:[%s266 + $0x28] sm:$0xff] %v963
      %972 = vst [vmem:[%s266 + $0x30] sm:$0xff] %v964
      %973 = vst [vmem:[%s266 + $0x38] sm:$0xff] %v965
      %v974 = vadd.f32 %v958, %v960
      %v975 = vadd.f32 %v974, %v962
      %v976 = vadd.f32 %v975, %v964
      %v977 = vrot.slane %v976, 4
      %v978 = vadd.f32 %v976, %v977
      %v979 = vrot.slane %v978, 2
      %v980 = vadd.f32 %v978, %v979
      %v981 = vrot.slane %v980, 1
      %v982 = vadd.f32 %v980, %v981
      %v983 = vadd.f32 %v959, %v961
      %v984 = vadd.f32 %v983, %v963
      %v985 = vadd.f32 %v984, %v965
      %v986 = vrot.slane %v985, 4
      %v987 = vadd.f32 %v985, %v986
      %v988 = vrot.slane %v987, 2
      %v989 = vadd.f32 %v987, %v988
      %v990 = vrot.slane %v989, 1
      %v991 = vadd.f32 %v989, %v990
      %v994 = vcombine.low %v982, %v991
      %v996 = vunpack.c.l.s4 1966171168
      %v997 = vunpack.c.0.s8 %v996
      %v998 = vlaneseq
      %v999 = vshrl.u32 %v998, 7
      %v1000 = vsub.s32 %v997, %v999
      %v1001 = vrot.slane %v994, %v1000
      %v1003 = vunpack.c.l.s4 1966171168
      %v1004 = vunpack.c.0.s8 %v1003
      %v1005 = vlaneseq
      %v1006 = vshrl.u32 %v1005, 7
      %v1007 = vsub.s32 %v1004, %v1006
      %v1008 = vrot.slane %v1001, %v1007
      %v1010 = vlaneseq
      %vm1011 = vcmp.ge.s32.totalorder %v1010, 0
      %vm1012 = vcmp.lt.s32.totalorder %v1010, 256
      %vm1013 = vmand %vm1011, %vm1012
      %1014 = vst.msk [vmem:[%s271] sm:$0x3] %vm1013, %v1008
      %v1015 = vmul.f32 %v958, %v958
      %v1016 = vmul.f32 %v959, %v959
      %v1017 = vmul.f32 %v960, %v960
      %v1018 = vmul.f32 %v961, %v961
      %v1019 = vmul.f32 %v962, %v962
      %v1020 = vmul.f32 %v963, %v963
      %v1021 = vmul.f32 %v964, %v964
      %v1022 = vmul.f32 %v965, %v965
      %v1023 = vadd.f32 %v1015, %v1017
      %v1024 = vadd.f32 %v1023, %v1019
      %v1025 = vadd.f32 %v1024, %v1021
      %v1026 = vrot.slane %v1025, 4
      %v1027 = vadd.f32 %v1025, %v1026
      %v1028 = vrot.slane %v1027, 2
      %v1029 = vadd.f32 %v1027, %v1028
      %v1030 = vrot.slane %v1029, 1
      %v1031 = vadd.f32 %v1029, %v1030
      %v1032 = vadd.f32 %v1016, %v1018
      %v1033 = vadd.f32 %v1032, %v1020
      %v1034 = vadd.f32 %v1033, %v1022
      %v1035 = vrot.slane %v1034, 4
      %v1036 = vadd.f32 %v1034, %v1035
      %v1037 = vrot.slane %v1036, 2
      %v1038 = vadd.f32 %v1036, %v1037
      %v1039 = vrot.slane %v1038, 1
      %v1040 = vadd.f32 %v1038, %v1039
      %v1043 = vcombine.low %v1031, %v1040
      %v1045 = vunpack.c.l.s4 1966171168
      %v1046 = vunpack.c.0.s8 %v1045
      %v1047 = vlaneseq
      %v1048 = vshrl.u32 %v1047, 7
      %v1049 = vsub.s32 %v1046, %v1048
      %v1050 = vrot.slane %v1043, %v1049
      %v1052 = vunpack.c.l.s4 1966171168
      %v1053 = vunpack.c.0.s8 %v1052
      %v1054 = vlaneseq
      %v1055 = vshrl.u32 %v1054, 7
      %v1056 = vsub.s32 %v1053, %v1055
      %v1057 = vrot.slane %v1050, %v1056
      %1059 = vst.msk [vmem:[%s275] sm:$0x3] %vm1013, %v1057
      %s1060 = smul.u32 4, %s18
      %p1061 = scmp.lt.s32.totalorder %s1060, 7
      %s1062 = scalar_select %p1061, %s1060, 7
      %s1063 = smul.addr %s1062, 2
      %s1064 = smul.addr %s1063, 8
      %s1065 = scalar_lea.vmem %s4, %s1064
      %p1066 = scmp.lt.s32.totalorder %s18, 1
      %s1067 = scalar_select %p1066, %s18, 1
      %s1068 = smul.addr %s1067, 2
      %s1069 = scalar_lea.vmem %s5, %s1068
      %p1070 = scmp.lt.s32.totalorder %s18, 1
      %s1071 = scalar_select %p1070, %s18, 1
      %s1072 = smul.addr %s1071, 2
      %s1073 = scalar_lea.vmem %s6, %s1072
      // Predicated region
      $region37: #{up_forward.2} parent=35 // pred_check
        %p1074 = pneg %p125
      $region38: #{up_forward.2} parent=35 // pred_check_branch
        %1076 = sbr.rel (%p1074) target = $region40
      $region39: #{up_forward.2} parent=35 // pred_region
        %s1077 = smul.u32 4, %s18
      $region40: #{up_forward.2} parent=35 // pred_fallthru
        _
      // Predicated region
      $region41: #{up_forward.2} parent=35 // pred_check
        %p1078 = pneg %p151
      $region42: #{up_forward.2} parent=35 // pred_check_branch
        %1080 = sbr.rel (%p1078) target = $region44
      $region43: #{up_forward.2} parent=35 // pred_region
        _
      $region44: #{up_forward.2} parent=35 // pred_fallthru
        _
      // Predicated region
      $region45: #{up_forward.2} parent=35 // pred_check
        %p1081 = pneg %p177
      $region46: #{up_forward.2} parent=35 // pred_check_branch
        %1083 = sbr.rel (%p1081) target = $region48
      $region47: #{up_forward.2} parent=35 // pred_region
        _
      $region48: #{up_forward.2} parent=35 // pred_fallthru
        _
    $region36: #{up_forward.2} parent=5 // pred_fallthru
      _
    %p1084 = scmp.le.s32.totalorder 2, %s13
    // Predicated region
    $region49: #{up_forward.2} parent=5 // pred_check
      %p1085 = pneg %p1084
    $region50: #{up_forward.2} parent=5 // pred_check_branch
      %1087 = sbr.rel (%p1085) target = $region52
    $region51: #{up_forward.2} parent=5 // pred_region
      %s1088 = ssub.s32 %s13, 2
      // Predicated region
      $region53: #{up_forward.2} parent=51 // pred_check
        %p1089 = pneg %p131
      $region54: #{up_forward.2} parent=51 // pred_check_branch
        %1091 = sbr.rel (%p1089) target = $region56
      $region55: #{up_forward.2} parent=51 // pred_region
        %s1092 = smul.u32 4, %s19
        %p1093 = scmp.lt.s32.totalorder %s1092, 7
        %s1094 = scalar_select %p1093, %s1092, 7
        %s1095 = smul.addr %s1094, 2
        %s1096 = smul.addr %s1095, 8
        %s1097 = scalar_lea.vmem %s4, %s1096
      $region56: #{up_forward.2} parent=51 // pred_fallthru
        _
      // Predicated region
      $region57: #{up_forward.2} parent=51 // pred_check
        %p1098 = pneg %p157
      $region58: #{up_forward.2} parent=51 // pred_check_branch
        %1100 = sbr.rel (%p1098) target = $region60
      $region59: #{up_forward.2} parent=51 // pred_region
        %p1101 = scmp.lt.s32.totalorder %s19, 1
        %s1102 = scalar_select %p1101, %s19, 1
        %s1103 = smul.addr %s1102, 2
        %s1104 = scalar_lea.vmem %s5, %s1103
      $region60: #{up_forward.2} parent=51 // pred_fallthru
        _
      // Predicated region
      $region61: #{up_forward.2} parent=51 // pred_check
        %p1105 = pneg %p183
      $region62: #{up_forward.2} parent=51 // pred_check_branch
        %1107 = sbr.rel (%p1105) target = $region64
      $region63: #{up_forward.2} parent=51 // pred_region
        %p1108 = scmp.lt.s32.totalorder %s19, 1
        %s1109 = scalar_select %p1108, %s19, 1
        %s1110 = smul.addr %s1109, 2
        %s1111 = scalar_lea.vmem %s6, %s1110
      $region64: #{up_forward.2} parent=51 // pred_fallthru
        _
    $region52: #{up_forward.2} parent=5 // pred_fallthru
      _
  $region6: #{up_forward.2} parent=0 // loop_footer
    %s17 = sadd.s32 1, %s13
  $region7: #{up_forward.2} parent=0 // loop_footer_branch
    %12 = sbr.rel target = $region3
  $region8: #{up_forward.2} parent=0 // loop_exit
    _

</llo_original>
